<compile_context>
chip_gen: v7x
topology: tpu7x:2x2x1
jax: 0.10.0
libtpu: 0.0.40
codegen_flags: <defaults>
</compile_context>

<pallas_src>
import functools

import jax
import jax.numpy as jnp
from jax import lax
from jax.experimental import pallas as pl
from jax.experimental.pallas import tpu as pltpu


# ------------------------- host-side operand preparation -------------------------
def _upsample_matrix(n_in, n_out):
    """Dense (n_out, n_in) matrix for 1-D bilinear resize with align_corners=True."""
    if n_in == 1:
        return jnp.ones((n_out, 1), jnp.float32)
    src = jnp.arange(n_out, dtype=jnp.float32) * (n_in - 1) / (n_out - 1)
    i0 = jnp.clip(jnp.floor(src).astype(jnp.int32), 0, n_in - 2)
    frac = src - i0.astype(jnp.float32)
    rows = jnp.arange(n_out)
    u = jnp.zeros((n_out, n_in), jnp.float32)
    u = u.at[rows, i0].add(1.0 - frac)
    u = u.at[rows, i0 + 1].add(frac)
    return u


def _padded_upsample_matrix(n_in, n_out, pad_lo, n_total):
    """(n_total, n_in): bilinear n_in->n_out upsample placed at rows
    [pad_lo, pad_lo + n_out); all other rows are zero (this realizes F.pad)."""
    u = _upsample_matrix(n_in, n_out)
    out = jnp.zeros((n_total, n_in), jnp.float32)
    return out.at[pad_lo:pad_lo + n_out, :].set(u)


def _toeplitz_bands(w_hwio, W):
    """Per-ky block-Toeplitz weights for a 3x3 / pad-1 conv, kx padding folded in.

    w_hwio: (3, 3, Ci, Co) -> (3, W*Ci, W*Co) so that, with
        band_ky[h, wq*Ci + c] = x[h+ky-1, wq, c]   (out-of-range rows = slab halo zeros)
        conv_out[h, w*Co + co] = sum_ky (band_ky @ T[ky])[h, w*Co + co].
    """
    _, _, ci, co = w_hwio.shape
    bands = []
    for ky in range(3):
        t = jnp.zeros((W, ci, W, co), jnp.float32)
        for kx in range(3):
            lo, hi = max(0, 1 - kx), min(W, W + 1 - kx)
            ow = jnp.arange(lo, hi)
            t = t.at[ow + kx - 1, :, ow, :].add(w_hwio[ky, kx])
        bands.append(t.reshape(W * ci, W * co))
    return jnp.stack(bands, axis=0)


# ------------------------------- fused Up kernel ---------------------------------
def _up_fused_kernel(x1_ref, x2_ref, uhp_ref, uwct_ref,
                     t1_ref, shift1_ref, t2_ref, shift2_ref,
                     o_ref, slab1, slabm,
                     *, H, W, C1, C2, Cmid, Cout):
    f32 = jnp.float32
    dt = slab1.dtype

    # Only the conv row-padding halo (rows 0 and H+1) remains: every other padding
    # zero (kx pad, F.pad) is folded into the host matrices and gets (re)written as
    # part of the full interior store each step, so this stays correct even when the
    # batch grid axis is split across TensorCores.
    slab1[0:1, :] = jnp.zeros((1, W * (C1 + C2)), dt)
    slab1[H + 1:H + 2, :] = jnp.zeros((1, W * (C1 + C2)), dt)
    slabm[0:1, :] = jnp.zeros((1, W * Cmid), dt)
    slabm[H + 1:H + 2, :] = jnp.zeros((1, W * Cmid), dt)

    # Bilinear x2 upsample of x1 (align_corners=True) + F.pad as two MXU matmuls:
    # U_H has the row pad folded in (zero rows), kron(U_W, I_C).T the column pad
    # (zero columns), so xu is already a full (H, W*C1) block.
    xh = jnp.dot(uhp_ref[...], x1_ref[0], preferred_element_type=f32)        # (H, W1*C1)
    xu = jnp.dot(xh.astype(dt), uwct_ref[...], preferred_element_type=f32)   # (H, W*C1)

    # concat([x2, up(x1)], channels) -> one slab [x2 block | x1 block]; both writes
    # are full-height, starting at lane 0 / W*C2 (no column halo, no odd offsets).
    slab1[1:1 + H, 0:W * C2] = x2_ref[0]
    slab1[1:1 + H, W * C2:W * (C1 + C2)] = xu.astype(dt)

    # conv1 (3x3, pad 1, no bias; BN scale pre-folded into weights): three row-band
    # matmuls with K = W*(C1+C2); accumulator initialized from the ky=0 dot.
    acc = jnp.dot(slab1[0:H, :], t1_ref[0], preferred_element_type=f32)
    acc = acc + jnp.dot(slab1[1:1 + H, :], t1_ref[1], preferred_element_type=f32)
    acc = acc + jnp.dot(slab1[2:2 + H, :], t1_ref[2], preferred_element_type=f32)
    y1 = jnp.maximum(acc + shift1_ref[...], 0.0)                 # f32 epilogue (BN+ReLU)
    slabm[1:1 + H, :] = y1.astype(dt)

    # conv2 + BN shift + ReLU, written as a lane-dense (H, W*Cout) slab.
    acc = jnp.dot(slabm[0:H, :], t2_ref[0], preferred_element_type=f32)
    acc = acc + jnp.dot(slabm[1:1 + H, :], t2_ref[1], preferred_element_type=f32)
    acc = acc + jnp.dot(slabm[2:2 + H, :], t2_ref[2], preferred_element_type=f32)
    o_ref[0] = jnp.maximum(acc + shift2_ref[...], 0.0).astype(o_ref.dtype)


# ------------------------------- Up module wrappers --------------------------------
def up_forward_nhwc(params, x1_nhwc, x2_nhwc, *, compute_dtype=jnp.bfloat16):
    """Fused Up forward, NHWC in / NHWC out (no wrapper transposes)."""
    x1 = x1_nhwc.astype(jnp.float32)
    x2 = x2_nhwc.astype(jnp.float32)
    N, H1, W1, C1 = x1.shape
    N2, H, W, C2 = x2.shape
    assert N2 == N
    H1u, W1u = 2 * H1, 2 * W1
    diffY, diffX = H - H1u, W - W1u
    assert diffY >= 0 and diffX >= 0   # TODO(synk): negative F.pad (cropping) unsupported
    padT, padL = diffY // 2, diffX // 2

    w1, w2 = params["w1"], params["w2"]
    Cmid, Cout = w1.shape[-1], w2.shape[-1]
    assert w1.shape[2] == C1 + C2 and w2.shape[2] == Cmid
    dt = compute_dtype

    # Host-side (free) parameter transforms: fold BN scale into conv weights, fold all
    # spatial padding into the upsample / Toeplitz matrices, tile the BN shifts to the
    # flat (W*C) lane layout.
    w1f = w1 * params["scale1"][None, None, None, :]
    w2f = w2 * params["scale2"][None, None, None, :]
    t1 = jnp.concatenate([_toeplitz_bands(w1f[:, :, :C2, :], W),      # x2 half of K
                          _toeplitz_bands(w1f[:, :, C2:, :], W)],     # x1 half of K
                         axis=1)                                      # (3, W*(C1+C2), W*Cmid)
    t2 = _toeplitz_bands(w2f, W)                                      # (3, W*Cmid, W*Cout)
    shift1 = jnp.tile(params["shift1"].reshape(1, Cmid), (1, W))      # (1, W*Cmid)  f32
    shift2 = jnp.tile(params["shift2"].reshape(1, Cout), (1, W))      # (1, W*Cout)  f32
    uhp = _padded_upsample_matrix(H1, H1u, padT, H)                   # (H, H1)  row pad folded
    uwp = _padded_upsample_matrix(W1, W1u, padL, W)                   # (W, W1)  col pad folded
    uwct = jnp.kron(uwp, jnp.eye(C1, dtype=jnp.float32)).T            # (W1*C1, W*C1)

    # Contiguous reshapes: (W, C) flattened onto the lane axis; bf16 MXU operands.
    x1f = x1.reshape(N, H1, W1 * C1).astype(dt)
    x2f = x2.reshape(N, H, W * C2).astype(dt)
    uhp, uwct, t1, t2 = (a.astype(dt) for a in (uhp, uwct, t1, t2))

    kernel = functools.partial(_up_fused_kernel, H=H, W=W,
                               C1=C1, C2=C2, Cmid=Cmid, Cout=Cout)

    flops = N * (2 * H * H1 * (W1 * C1) + 2 * H * (W1 * C1) * (W * C1)
                 + 6 * H * (W * (C1 + C2)) * (W * Cmid)
                 + 6 * H * (W * Cmid) * (W * Cout))
    itemsize = jnp.dtype(dt).itemsize
    bytes_accessed = (itemsize * int(x1f.size + x2f.size + uhp.size + uwct.size
                                     + t1.size + t2.size)
                      + 4 * int(shift1.size + shift2.size + N * H * W * Cout))

    out_flat = pl.pallas_call(
        kernel,
        out_shape=jax.ShapeDtypeStruct((N, H, W * Cout), jnp.float32),
        grid_spec=pltpu.PrefetchScalarGridSpec(
            num_scalar_prefetch=0,
            grid=(N,),
            in_specs=[
                pl.BlockSpec((1, H1, W1 * C1), lambda n: (n, 0, 0)),           # x1 (flat)
                pl.BlockSpec((1, H, W * C2), lambda n: (n, 0, 0)),             # x2 (flat)
                pl.BlockSpec((H, H1), lambda n: (0, 0)),                       # U_H (padded)
                pl.BlockSpec((W1 * C1, W * C1), lambda n: (0, 0)),             # kron(U_W,I).T
                pl.BlockSpec((3, W * (C1 + C2), W * Cmid), lambda n: (0, 0, 0)),  # conv1 bands
                pl.BlockSpec((1, W * Cmid), lambda n: (0, 0)),                 # shift1
                pl.BlockSpec((3, W * Cmid, W * Cout), lambda n: (0, 0, 0)),    # conv2 bands
                pl.BlockSpec((1, W * Cout), lambda n: (0, 0)),                 # shift2
            ],
            out_specs=pl.BlockSpec((1, H, W * Cout), lambda n: (n, 0, 0)),
            scratch_shapes=[
                pltpu.VMEM((H + 2, W * (C1 + C2)), dt),   # [x2 | up(x1)] slab (row halo)
                pltpu.VMEM((H + 2, W * Cmid), dt),        # conv1 output slab (row halo)
            ]),
        compiler_params=pltpu.CompilerParams(dimension_semantics=("parallel",)),
        cost_estimate=pl.CostEstimate(flops=int(flops), transcendentals=0,
                                      bytes_accessed=int(bytes_accessed)),
    )(x1f, x2f, uhp, uwct, t1, shift1, t2, shift2)

    return out_flat.reshape(N, H, W, Cout)


def up_forward(params, x1_nchw, x2_nchw, *, compute_dtype=jnp.bfloat16):
    """NCHW-compatible wrapper matching the PyTorch module interface.

    TODO(synk): at real feature-map sizes prefer up_forward_nhwc directly -- these
    NCHW<->NHWC transposes are extra full HBM passes outside the fused kernel.
    """
    x1 = jnp.transpose(x1_nchw, (0, 2, 3, 1))
    x2 = jnp.transpose(x2_nchw, (0, 2, 3, 1))
    out = up_forward_nhwc(params, x1, x2, compute_dtype=compute_dtype)
    return jnp.transpose(out, (0, 3, 1, 2))


# ------------------------------- params & reference --------------------------------
def init_up_params(key, in_channels, out_channels, bilinear=True):
    assert bilinear  # TODO(synk): ConvTranspose2d (bilinear=False) branch not implemented
    mid = in_channels // 2        # DoubleConv(in, out, mid=in//2) in the bilinear branch
    eps = 1e-5
    ks = jax.random.split(key, 6)
    params = {}
    cfg = [(in_channels, mid, ks[0], ks[1], ks[2]),
           (mid, out_channels, ks[3], ks[4], ks[5])]
    for i, (cin, cout, kw, kg, kb) in enumerate(cfg, start=1):
        fan_in = cin * 9
        w = jax.random.normal(kw, (3, 3, cin, cout), jnp.float32) * (2.0 / fan_in) ** 0.5
        gamma = 1.0 + 0.1 * jax.random.normal(kg, (cout,), jnp.float32)
        beta = 0.1 * jax.random.normal(kb, (cout,), jnp.float32)
        running_mean = jnp.zeros((cout,), jnp.float32)
        running_var = jnp.ones((cout,), jnp.float32)
        scale = gamma / jnp.sqrt(running_var + eps)
        shift = beta - running_mean * scale
        params[f"w{i}"], params[f"scale{i}"], params[f"shift{i}"] = w, scale, shift
    return params


def _bilinear_lerp_axis(x, axis, n_out):
    n_in = x.shape[axis]
    if n_in == 1:
        return jnp.concatenate([x] * n_out, axis=axis)
    src = jnp.arange(n_out, dtype=jnp.float32) * (n_in - 1) / (n_out - 1)
    i0 = jnp.clip(jnp.floor(src).astype(jnp.int32), 0, n_in - 2)
    frac = src - i0.astype(jnp.float32)
    a = jnp.take(x, i0, axis=axis)
    b = jnp.take(x, i0 + 1, axis=axis)
    shape = [1] * x.ndim
    shape[axis] = n_out
    frac = frac.reshape(shape)
    return a * (1.0 - frac) + b * frac


def up_reference(params, x1_nchw, x2_nchw):
    # Pure-JAX reference (no Pallas): mirrors PyTorch Up.forward in eval mode.
    x1 = jnp.transpose(x1_nchw, (0, 2, 3, 1)).astype(jnp.float32)
    x2 = jnp.transpose(x2_nchw, (0, 2, 3, 1)).astype(jnp.float32)
    x1 = _bilinear_lerp_axis(x1, axis=1, n_out=2 * x1.shape[1])
    x1 = _bilinear_lerp_axis(x1, axis=2, n_out=2 * x1.shape[2])
    diffY = x2.shape[1] - x1.shape[1]
    diffX = x2.shape[2] - x1.shape[2]
    x1 = jnp.pad(x1, ((0, 0), (diffY // 2, diffY - diffY // 2),
                      (diffX // 2, diffX - diffX // 2), (0, 0)))
    x = jnp.concatenate([x2, x1], axis=-1)
    for i in (1, 2):
        x = lax.conv_general_dilated(
            x, params[f"w{i}"], window_strides=(1, 1), padding="SAME",
            dimension_numbers=("NHWC", "HWIO", "NHWC"))
        x = x * params[f"scale{i}"] + params[f"shift{i}"]
        x = jnp.maximum(x, 0.0)
    return jnp.transpose(x, (0, 3, 1, 2))


if __name__ == "__main__":
    # Typical UNet decoder stage: x1 is the low-res feature (in_channels//2 channels),
    # x2 the skip connection (in_channels//2 channels); concat -> in_channels.
    in_channels, out_channels = 8, 8
    C1 = C2 = in_channels // 2
    N = 2

    key = jax.random.PRNGKey(0)
    kp, krest = jax.random.split(key)
    params = init_up_params(kp, in_channels, out_channels)

    # (H1, W1, H2, W2): even case (F.pad is a no-op) and odd case (F.pad of 1 each side).
    cases = [(8, 8, 16, 16), (7, 7, 16, 16)]
    for (H1, W1, H2, W2) in cases:
        krest, k1, k2 = jax.random.split(krest, 3)
        x1 = jax.random.normal(k1, (N, C1, H1, W1), jnp.float32)   # NCHW
        x2 = jax.random.normal(k2, (N, C2, H2, W2), jnp.float32)   # NCHW
        ref = jax.block_until_ready(up_reference(params, x1, x2))

        # f32 MXU operands: tight check of the fused kernel's math vs the reference.
        out32 = jax.block_until_ready(
            up_forward(params, x1, x2, compute_dtype=jnp.float32))
        assert out32.shape == (N, out_channels, H2, W2), out32.shape
        err32 = float(jnp.max(jnp.abs(out32 - ref)))
        assert jnp.allclose(out32, ref, atol=2e-3, rtol=2e-3), err32

        # bf16 MXU operands (default fast path): looser tolerance for bf16 rounding of
        # activations / folded weights (accumulation and epilogue are still f32).
        out16 = jax.block_until_ready(up_forward(params, x1, x2))
        assert out16.shape == (N, out_channels, H2, W2), out16.shape
        err16 = float(jnp.max(jnp.abs(out16 - ref)))
        assert jnp.allclose(out16, ref, atol=7e-2, rtol=7e-2), err16

    print("KERNEL_OK")
</pallas_src>

<mosaic_0001>
module attributes {stable_mosaic.version = 11 : i64} {
  func.func @_up_fused_kernel(%arg0: i32, %arg1: memref<1x8x32xf32, #tpu.memory_space<vmem>>, %arg2: memref<1x16x64xf32, #tpu.memory_space<vmem>>, %arg3: memref<16x8xf32, #tpu.memory_space<vmem>>, %arg4: memref<32x64xf32, #tpu.memory_space<vmem>>, %arg5: memref<3x128x64xf32, #tpu.memory_space<vmem>>, %arg6: memref<1x64xf32, #tpu.memory_space<vmem>>, %arg7: memref<3x64x128xf32, #tpu.memory_space<vmem>>, %arg8: memref<1x128xf32, #tpu.memory_space<vmem>>, %arg9: memref<1x16x128xf32, #tpu.memory_space<vmem>>, %arg10: memref<18x128xf32, #tpu.memory_space<vmem>>, %arg11: memref<18x64xf32, #tpu.memory_space<vmem>>) attributes {dimension_semantics = [#tpu.dimension_semantics<parallel>], iteration_bounds = array<i64: 2>, scalar_prefetch = 0 : i64, scratch_operands = 2 : i64, tpu.core_type = #tpu.core_type<tc>, window_params = [{transform_indices = @transform_0, window_bounds = array<i64: 1, 8, 32>}, {transform_indices = @transform_1, window_bounds = array<i64: 1, 16, 64>}, {pipeline_mode = #tpu.pipeline_mode<synchronous>, transform_indices = @transform_2, window_bounds = array<i64: 16, 8>}, {pipeline_mode = #tpu.pipeline_mode<synchronous>, transform_indices = @transform_3, window_bounds = array<i64: 32, 64>}, {pipeline_mode = #tpu.pipeline_mode<synchronous>, transform_indices = @transform_4, window_bounds = array<i64: 3, 128, 64>}, {pipeline_mode = #tpu.pipeline_mode<synchronous>, transform_indices = @transform_5, window_bounds = array<i64: 1, 64>}, {pipeline_mode = #tpu.pipeline_mode<synchronous>, transform_indices = @transform_6, window_bounds = array<i64: 3, 64, 128>}, {pipeline_mode = #tpu.pipeline_mode<synchronous>, transform_indices = @transform_7, window_bounds = array<i64: 1, 128>}, {transform_indices = @transform_8, window_bounds = array<i64: 1, 16, 128>}]} {
    %cst = arith.constant 0.000000e+00 : f32
    %0 = vector.broadcast %cst : f32 to vector<1x128xf32>
    %c0 = arith.constant 0 : index
    %c0_0 = arith.constant 0 : index
    %1 = vector.load %arg10[%c0, %c0_0] : memref<18x128xf32, #tpu.memory_space<vmem>>, vector<1x128xf32>
    tpu.vector_store %arg10[%c0, %c0_0], %0 {strides = array<i32>} : memref<18x128xf32, #tpu.memory_space<vmem>>, vector<1x128xf32>,
    %cst_1 = arith.constant 0.000000e+00 : f32
    %2 = vector.broadcast %cst_1 : f32 to vector<1x128xf32>
    %c17 = arith.constant 17 : index
    %c0_2 = arith.constant 0 : index
    %3 = vector.load %arg10[%c17, %c0_2] : memref<18x128xf32, #tpu.memory_space<vmem>>, vector<1x128xf32>
    tpu.vector_store %arg10[%c17, %c0_2], %2 {strides = array<i32>} : memref<18x128xf32, #tpu.memory_space<vmem>>, vector<1x128xf32>,
    %cst_3 = arith.constant 0.000000e+00 : f32
    %4 = vector.broadcast %cst_3 : f32 to vector<1x64xf32>
    %c0_4 = arith.constant 0 : index
    %c0_5 = arith.constant 0 : index
    %5 = vector.load %arg11[%c0_4, %c0_5] : memref<18x64xf32, #tpu.memory_space<vmem>>, vector<1x64xf32>
    tpu.vector_store %arg11[%c0_4, %c0_5], %4 {strides = array<i32>} : memref<18x64xf32, #tpu.memory_space<vmem>>, vector<1x64xf32>,
    %cst_6 = arith.constant 0.000000e+00 : f32
    %6 = vector.broadcast %cst_6 : f32 to vector<1x64xf32>
    %c17_7 = arith.constant 17 : index
    %c0_8 = arith.constant 0 : index
    %7 = vector.load %arg11[%c17_7, %c0_8] : memref<18x64xf32, #tpu.memory_space<vmem>>, vector<1x64xf32>
    tpu.vector_store %arg11[%c17_7, %c0_8], %6 {strides = array<i32>} : memref<18x64xf32, #tpu.memory_space<vmem>>, vector<1x64xf32>,
    %c0_9 = arith.constant 0 : index
    %c0_10 = arith.constant 0 : index
    %8 = vector.load %arg3[%c0_9, %c0_10] : memref<16x8xf32, #tpu.memory_space<vmem>>, vector<16x8xf32>
    %c0_11 = arith.constant 0 : index
    %c0_12 = arith.constant 0 : index
    %c0_13 = arith.constant 0 : index
    %9 = vector.load %arg1[%c0_11, %c0_12, %c0_13] : memref<1x8x32xf32, #tpu.memory_space<vmem>>, vector<1x8x32xf32>
    %10 = vector.shape_cast %9 : vector<1x8x32xf32> to vector<8x32xf32>
    %cst_14 = arith.constant dense<0.000000e+00> : vector<16x32xf32>
    %11 = tpu.matmul %8, %10, %cst_14 {dimension_numbers = #tpu.dot_dimension_numbers<[1], [0], [0], [1], [0, 0, 1, 1], [], []>} : vector<16x8xf32>, vector<8x32xf32>, vector<16x32xf32> -> vector<16x32xf32>
    %c0_15 = arith.constant 0 : index
    %c0_16 = arith.constant 0 : index
    %12 = vector.load %arg4[%c0_15, %c0_16] : memref<32x64xf32, #tpu.memory_space<vmem>>, vector<32x64xf32>
    %cst_17 = arith.constant dense<0.000000e+00> : vector<16x64xf32>
    %13 = tpu.matmul %11, %12, %cst_17 {dimension_numbers = #tpu.dot_dimension_numbers<[1], [0], [0], [1], [0, 0, 1, 1], [], []>} : vector<16x32xf32>, vector<32x64xf32>, vector<16x64xf32> -> vector<16x64xf32>
    %c0_18 = arith.constant 0 : index
    %c0_19 = arith.constant 0 : index
    %c0_20 = arith.constant 0 : index
    %14 = vector.load %arg2[%c0_18, %c0_19, %c0_20] : memref<1x16x64xf32, #tpu.memory_space<vmem>>, vector<1x16x64xf32>
    %15 = vector.shape_cast %14 : vector<1x16x64xf32> to vector<16x64xf32>
    %c1 = arith.constant 1 : index
    %c0_21 = arith.constant 0 : index
    %16 = vector.load %arg10[%c1, %c0_21] : memref<18x128xf32, #tpu.memory_space<vmem>>, vector<16x64xf32>
    tpu.vector_store %arg10[%c1, %c0_21], %15 {strides = array<i32>} : memref<18x128xf32, #tpu.memory_space<vmem>>, vector<16x64xf32>,
    %c1_22 = arith.constant 1 : index
    %c64 = arith.constant 64 : index
    %17 = vector.load %arg10[%c1_22, %c64] : memref<18x128xf32, #tpu.memory_space<vmem>>, vector<16x64xf32>
    tpu.vector_store %arg10[%c1_22, %c64], %13 {strides = array<i32>} : memref<18x128xf32, #tpu.memory_space<vmem>>, vector<16x64xf32>,
    %c0_23 = arith.constant 0 : index
    %c0_24 = arith.constant 0 : index
    %18 = vector.load %arg10[%c0_23, %c0_24] : memref<18x128xf32, #tpu.memory_space<vmem>>, vector<16x128xf32>
    %c0_25 = arith.constant 0 : index
    %c0_26 = arith.constant 0 : index
    %c0_27 = arith.constant 0 : index
    %19 = vector.load %arg5[%c0_25, %c0_26, %c0_27] : memref<3x128x64xf32, #tpu.memory_space<vmem>>, vector<1x128x64xf32>
    %20 = vector.shape_cast %19 : vector<1x128x64xf32> to vector<128x64xf32>
    %cst_28 = arith.constant dense<0.000000e+00> : vector<16x64xf32>
    %21 = tpu.matmul %18, %20, %cst_28 {dimension_numbers = #tpu.dot_dimension_numbers<[1], [0], [0], [1], [0, 0, 1, 1], [], []>} : vector<16x128xf32>, vector<128x64xf32>, vector<16x64xf32> -> vector<16x64xf32>
    %c1_29 = arith.constant 1 : index
    %c0_30 = arith.constant 0 : index
    %22 = vector.load %arg10[%c1_29, %c0_30] : memref<18x128xf32, #tpu.memory_space<vmem>>, vector<16x128xf32>
    %c1_31 = arith.constant 1 : index
    %c0_32 = arith.constant 0 : index
    %c0_33 = arith.constant 0 : index
    %23 = vector.load %arg5[%c1_31, %c0_32, %c0_33] : memref<3x128x64xf32, #tpu.memory_space<vmem>>, vector<1x128x64xf32>
    %24 = vector.shape_cast %23 : vector<1x128x64xf32> to vector<128x64xf32>
    %cst_34 = arith.constant dense<0.000000e+00> : vector<16x64xf32>
    %25 = tpu.matmul %22, %24, %cst_34 {dimension_numbers = #tpu.dot_dimension_numbers<[1], [0], [0], [1], [0, 0, 1, 1], [], []>} : vector<16x128xf32>, vector<128x64xf32>, vector<16x64xf32> -> vector<16x64xf32>
    %26 = arith.addf %21, %25 : vector<16x64xf32>
    %c2 = arith.constant 2 : index
    %c0_35 = arith.constant 0 : index
    %27 = vector.load %arg10[%c2, %c0_35] : memref<18x128xf32, #tpu.memory_space<vmem>>, vector<16x128xf32>
    %c2_36 = arith.constant 2 : index
    %c0_37 = arith.constant 0 : index
    %c0_38 = arith.constant 0 : index
    %28 = vector.load %arg5[%c2_36, %c0_37, %c0_38] : memref<3x128x64xf32, #tpu.memory_space<vmem>>, vector<1x128x64xf32>
    %29 = vector.shape_cast %28 : vector<1x128x64xf32> to vector<128x64xf32>
    %cst_39 = arith.constant dense<0.000000e+00> : vector<16x64xf32>
    %30 = tpu.matmul %27, %29, %cst_39 {dimension_numbers = #tpu.dot_dimension_numbers<[1], [0], [0], [1], [0, 0, 1, 1], [], []>} : vector<16x128xf32>, vector<128x64xf32>, vector<16x64xf32> -> vector<16x64xf32>
    %31 = arith.addf %26, %30 : vector<16x64xf32>
    %c0_40 = arith.constant 0 : index
    %c0_41 = arith.constant 0 : index
    %32 = vector.load %arg6[%c0_40, %c0_41] : memref<1x64xf32, #tpu.memory_space<vmem>>, vector<1x64xf32>
    %33 = vector.broadcast %32 : vector<1x64xf32> to vector<16x64xf32>
    %34 = arith.addf %31, %33 : vector<16x64xf32>
    %cst_42 = arith.constant 0.000000e+00 : f32
    %35 = vector.broadcast %cst_42 : f32 to vector<16x64xf32>
    %36 = arith.maximumf %34, %35 : vector<16x64xf32>
    %c1_43 = arith.constant 1 : index
    %c0_44 = arith.constant 0 : index
    %37 = vector.load %arg11[%c1_43, %c0_44] : memref<18x64xf32, #tpu.memory_space<vmem>>, vector<16x64xf32>
    tpu.vector_store %arg11[%c1_43, %c0_44], %36 {strides = array<i32>} : memref<18x64xf32, #tpu.memory_space<vmem>>, vector<16x64xf32>,
    %c0_45 = arith.constant 0 : index
    %c0_46 = arith.constant 0 : index
    %38 = vector.load %arg11[%c0_45, %c0_46] : memref<18x64xf32, #tpu.memory_space<vmem>>, vector<16x64xf32>
    %c0_47 = arith.constant 0 : index
    %c0_48 = arith.constant 0 : index
    %c0_49 = arith.constant 0 : index
    %39 = vector.load %arg7[%c0_47, %c0_48, %c0_49] : memref<3x64x128xf32, #tpu.memory_space<vmem>>, vector<1x64x128xf32>
    %40 = vector.shape_cast %39 : vector<1x64x128xf32> to vector<64x128xf32>
    %cst_50 = arith.constant dense<0.000000e+00> : vector<16x128xf32>
    %41 = tpu.matmul %38, %40, %cst_50 {dimension_numbers = #tpu.dot_dimension_numbers<[1], [0], [0], [1], [0, 0, 1, 1], [], []>} : vector<16x64xf32>, vector<64x128xf32>, vector<16x128xf32> -> vector<16x128xf32>
    %c1_51 = arith.constant 1 : index
    %c0_52 = arith.constant 0 : index
    %42 = vector.load %arg11[%c1_51, %c0_52] : memref<18x64xf32, #tpu.memory_space<vmem>>, vector<16x64xf32>
    %c1_53 = arith.constant 1 : index
    %c0_54 = arith.constant 0 : index
    %c0_55 = arith.constant 0 : index
    %43 = vector.load %arg7[%c1_53, %c0_54, %c0_55] : memref<3x64x128xf32, #tpu.memory_space<vmem>>, vector<1x64x128xf32>
    %44 = vector.shape_cast %43 : vector<1x64x128xf32> to vector<64x128xf32>
    %cst_56 = arith.constant dense<0.000000e+00> : vector<16x128xf32>
    %45 = tpu.matmul %42, %44, %cst_56 {dimension_numbers = #tpu.dot_dimension_numbers<[1], [0], [0], [1], [0, 0, 1, 1], [], []>} : vector<16x64xf32>, vector<64x128xf32>, vector<16x128xf32> -> vector<16x128xf32>
    %46 = arith.addf %41, %45 : vector<16x128xf32>
    %c2_57 = arith.constant 2 : index
    %c0_58 = arith.constant 0 : index
    %47 = vector.load %arg11[%c2_57, %c0_58] : memref<18x64xf32, #tpu.memory_space<vmem>>, vector<16x64xf32>
    %c2_59 = arith.constant 2 : index
    %c0_60 = arith.constant 0 : index
    %c0_61 = arith.constant 0 : index
    %48 = vector.load %arg7[%c2_59, %c0_60, %c0_61] : memref<3x64x128xf32, #tpu.memory_space<vmem>>, vector<1x64x128xf32>
    %49 = vector.shape_cast %48 : vector<1x64x128xf32> to vector<64x128xf32>
    %cst_62 = arith.constant dense<0.000000e+00> : vector<16x128xf32>
    %50 = tpu.matmul %47, %49, %cst_62 {dimension_numbers = #tpu.dot_dimension_numbers<[1], [0], [0], [1], [0, 0, 1, 1], [], []>} : vector<16x64xf32>, vector<64x128xf32>, vector<16x128xf32> -> vector<16x128xf32>
    %51 = arith.addf %46, %50 : vector<16x128xf32>
    %c0_63 = arith.constant 0 : index
    %c0_64 = arith.constant 0 : index
    %52 = vector.load %arg8[%c0_63, %c0_64] : memref<1x128xf32, #tpu.memory_space<vmem>>, vector<1x128xf32>
    %53 = vector.broadcast %52 : vector<1x128xf32> to vector<16x128xf32>
    %54 = arith.addf %51, %53 : vector<16x128xf32>
    %cst_65 = arith.constant 0.000000e+00 : f32
    %55 = vector.broadcast %cst_65 : f32 to vector<16x128xf32>
    %56 = arith.maximumf %54, %55 : vector<16x128xf32>
    %c0_66 = arith.constant 0 : index
    %c0_67 = arith.constant 0 : index
    %c0_68 = arith.constant 0 : index
    %57 = vector.load %arg9[%c0_66, %c0_67, %c0_68] : memref<1x16x128xf32, #tpu.memory_space<vmem>>, vector<1x16x128xf32>
    %58 = vector.shape_cast %57 : vector<1x16x128xf32> to vector<16x128xf32>
    %59 = vector.shape_cast %56 : vector<16x128xf32> to vector<1x16x128xf32>
    tpu.vector_store %arg9[%c0_66, %c0_67, %c0_68], %59 {strides = array<i32>} : memref<1x16x128xf32, #tpu.memory_space<vmem>>, vector<1x16x128xf32>,
    return
  }
  func.func @transform_0(%arg0: i32) -> (i32, i32, i32) {
    %c0_i32 = arith.constant 0 : i32
    %c0_i32_0 = arith.constant 0 : i32
    %c0_i32_1 = arith.constant 0 : i32
    return %arg0, %c0_i32, %c0_i32_0 : i32, i32, i32
  }
  func.func @transform_1(%arg0: i32) -> (i32, i32, i32) {
    %c0_i32 = arith.constant 0 : i32
    %c0_i32_0 = arith.constant 0 : i32
    %c0_i32_1 = arith.constant 0 : i32
    return %arg0, %c0_i32, %c0_i32_0 : i32, i32, i32
  }
  func.func @transform_2(%arg0: i32) -> (i32, i32) {
    %c0_i32 = arith.constant 0 : i32
    %c0_i32_0 = arith.constant 0 : i32
    %c0_i32_1 = arith.constant 0 : i32
    return %c0_i32, %c0_i32_0 : i32, i32
  }
  func.func @transform_3(%arg0: i32) -> (i32, i32) {
    %c0_i32 = arith.constant 0 : i32
    %c0_i32_0 = arith.constant 0 : i32
    %c0_i32_1 = arith.constant 0 : i32
    return %c0_i32, %c0_i32_0 : i32, i32
  }
  func.func @transform_4(%arg0: i32) -> (i32, i32, i32) {
    %c0_i32 = arith.constant 0 : i32
    %c0_i32_0 = arith.constant 0 : i32
    %c0_i32_1 = arith.constant 0 : i32
    %c0_i32_2 = arith.constant 0 : i32
    return %c0_i32, %c0_i32_0, %c0_i32_1 : i32, i32, i32
  }
  func.func @transform_5(%arg0: i32) -> (i32, i32) {
    %c0_i32 = arith.constant 0 : i32
    %c0_i32_0 = arith.constant 0 : i32
    %c0_i32_1 = arith.constant 0 : i32
    return %c0_i32, %c0_i32_0 : i32, i32
  }
  func.func @transform_6(%arg0: i32) -> (i32, i32, i32) {
    %c0_i32 = arith.constant 0 : i32
    %c0_i32_0 = arith.constant 0 : i32
    %c0_i32_1 = arith.constant 0 : i32
    %c0_i32_2 = arith.constant 0 : i32
    return %c0_i32, %c0_i32_0, %c0_i32_1 : i32, i32, i32
  }
  func.func @transform_7(%arg0: i32) -> (i32, i32) {
    %c0_i32 = arith.constant 0 : i32
    %c0_i32_0 = arith.constant 0 : i32
    %c0_i32_1 = arith.constant 0 : i32
    return %c0_i32, %c0_i32_0 : i32, i32
  }
  func.func @transform_8(%arg0: i32) -> (i32, i32, i32) {
    %c0_i32 = arith.constant 0 : i32
    %c0_i32_0 = arith.constant 0 : i32
    %c0_i32_1 = arith.constant 0 : i32
    return %arg0, %c0_i32, %c0_i32_0 : i32, i32, i32
  }
}

</mosaic_0001>

<llo_original>
// kernel: tpu_custom_call.1
$region0: #{tpu_custom_call.1}
  #allocation0 [shape = 'u32[]', space=smem, size = 0x4, offset = 0x4, fixed_abs, tag = 'smem constant byte address 0x4 - core index']
  #allocation1 [shape = 'u32[144,128]{1,0:T(1,128)}', space=vmem, size = 0x12000, scoped, tag = 'internal scratch']
  #allocation2 [shape = 'f32[18,128]{1,0:T(8,128)}', space=vmem, size = 0x3000, scoped, tag = 'scratch operand']
  #allocation3 [shape = 'f32[18,64]{1,0:T(8,128)}', space=vmem, size = 0x3000, scoped, tag = 'scratch operand']
  %s0 = inlined_call_operand.vmem [shape: f32[2,8,32], index: 0, kind: input, shape index: {}]
  %s1 = inlined_call_operand.vmem [shape: f32[2,16,64], index: 1, kind: input, shape index: {}]
  %s2 = inlined_call_operand.vmem [shape: f32[16,8], index: 2, kind: input, shape index: {}]
  %s3 = inlined_call_operand.vmem [shape: f32[32,64], index: 3, kind: input, shape index: {}]
  %s4 = inlined_call_operand.vmem [shape: f32[3,128,64], index: 4, kind: input, shape index: {}]
  %s5 = inlined_call_operand.vmem [shape: f32[1,64], index: 5, kind: input, shape index: {}]
  %s6 = inlined_call_operand.vmem [shape: f32[3,64,128], index: 6, kind: input, shape index: {}]
  %s7 = inlined_call_operand.vmem [shape: f32[1,128], index: 7, kind: input, shape index: {}]
  %s8 = inlined_call_operand.hbm [shape: f32[2,16,128], index: 8, kind: output, shape index: {}]
  %s9 = sld [smem:[#allocation0]]
  $region65: #{tpu_custom_call.1} parent=0
    _
  %s11 = ssub.s32 1, %s9
  %s12 = scalar_select 0, %s11, %s9
  $region1: #{tpu_custom_call.1} parent=0
    #allocation4 [shape = 'u8[16384]{0}', space=vmem, size = 0x4000, scoped, tag = 'output window, operand 0']
    #allocation5 [shape = 's32[2]{0}', space=sflag, size = 0x8, scoped, tag = 'scoped memory for tpu_custom_call.1']
    %13 = vsyncpa [#allocation5], 0
    %s14 = scalar_lea.sflag [#allocation5], 1
    %15 = vsyncpa %s14, 0
    loop: start=0, step=1, limit=4
    $region2: #{tpu_custom_call.1} parent=1 // loop_pre_header
      _
    $region3: #{tpu_custom_call.1} parent=1 // loop_header
      %s17 = sphi 0, %s21
      %p18 = scmp.ge.s32.totalorder %s17, 4
      %s27 = sphi 0, %s29
      %s30 = sphi 0, %s27
      %s31 = sphi 0, %s30
      %s47 = sphi 0, %s31
      %s53 = sphi 0, %s55
      %s56 = sphi 0, %s53
      %s57 = sphi 0, %s56
      %s73 = sphi 0, %s57
      %s77 = sphi 0, %s77
      %s79 = sphi 0, %s77
      %s80 = sphi 0, %s79
      %s94 = sphi 0, %s80
      %s98 = sphi 0, %s98
      %s100 = sphi 0, %s98
      %s101 = sphi 0, %s100
      %s115 = sphi 0, %s101
      %s119 = sphi 0, %s119
      %s121 = sphi 0, %s119
      %s122 = sphi 0, %s121
      %s136 = sphi 0, %s122
      %s140 = sphi 0, %s140
      %s142 = sphi 0, %s140
      %s143 = sphi 0, %s142
      %s157 = sphi 0, %s143
      %s161 = sphi 0, %s161
      %s163 = sphi 0, %s161
      %s164 = sphi 0, %s163
      %s178 = sphi 0, %s164
      %s182 = sphi 0, %s182
      %s184 = sphi 0, %s182
      %s185 = sphi 0, %s184
      %s199 = sphi 0, %s185
      %s205 = sphi 0, %s207
      %s208 = sphi 0, %s205
      %s209 = sphi 0, %s208
      %s225 = sphi 0, %s209
    $region4: #{tpu_custom_call.1} parent=1 // loop_header_branch
      %20 = sbr.rel (%p18) target = $region8
    $region5: #{tpu_custom_call.1} parent=1 // loop_body
      %s22 = ssub.s32 %s17, 1
      %s23 = ssub.s32 %s17, 2
      %s24 = sadd.s32 %s17, 1
      %s25 = ssub.s32 %s17, %s24
      %p26 = scmp.eq.s32.totalorder %s25, 0
      %s28 = sadd.s32 %s27, 1
      %s29 = scalar_select %p26, %s27, %s28
      %p32 = pneg %p26
      %p33 = scmp.eq.s32.totalorder %s17, 1
      %p34 = por %p32, %p33
      %p35 = scmp.ne.s32.totalorder %s27, %s30
      %p36 = scmp.eq.s32.totalorder %s17, 0
      %p37 = por %p35, %p36
      %p38 = scmp.ne.s32.totalorder %s27, %s30
      %p39 = scmp.eq.s32.totalorder %s22, 1
      %p40 = por %p38, %p39
      %p41 = scmp.ne.s32.totalorder %s30, %s31
      %p42 = scmp.eq.s32.totalorder %s22, 0
      %p43 = por %p41, %p42
      %p44 = scmp.ne.s32.totalorder %s30, %s31
      %p45 = scmp.eq.s32.totalorder %s23, 1
      %p46 = por %p44, %p45
      %p48 = scmp.ne.s32.totalorder %s31, %s47
      %p49 = scmp.eq.s32.totalorder %s23, 0
      %p50 = por %p48, %p49
      %s51 = ssub.s32 %s17, %s24
      %p52 = scmp.eq.s32.totalorder %s51, 0
      %s54 = sadd.s32 %s53, 1
      %s55 = scalar_select %p52, %s53, %s54
      %p58 = pneg %p52
      %p59 = scmp.eq.s32.totalorder %s17, 1
      %p60 = por %p58, %p59
      %p61 = scmp.ne.s32.totalorder %s53, %s56
      %p62 = scmp.eq.s32.totalorder %s17, 0
      %p63 = por %p61, %p62
      %p64 = scmp.ne.s32.totalorder %s53, %s56
      %p65 = scmp.eq.s32.totalorder %s22, 1
      %p66 = por %p64, %p65
      %p67 = scmp.ne.s32.totalorder %s56, %s57
      %p68 = scmp.eq.s32.totalorder %s22, 0
      %p69 = por %p67, %p68
      %p70 = scmp.ne.s32.totalorder %s56, %s57
      %p71 = scmp.eq.s32.totalorder %s23, 1
      %p72 = por %p70, %p71
      %p74 = scmp.ne.s32.totalorder %s57, %s73
      %p75 = scmp.eq.s32.totalorder %s23, 0
      %p76 = por %p74, %p75
      %s78 = sadd.s32 %s77, 1
      %p81 = scmp.eq.s32.totalorder %s17, 1
      %p82 = scmp.ne.s32.totalorder %s77, %s79
      %p83 = scmp.eq.s32.totalorder %s17, 0
      %p84 = por %p82, %p83
      %p85 = scmp.ne.s32.totalorder %s77, %s79
      %p86 = scmp.eq.s32.totalorder %s22, 1
      %p87 = por %p85, %p86
      %p88 = scmp.ne.s32.totalorder %s79, %s80
      %p89 = scmp.eq.s32.totalorder %s22, 0
      %p90 = por %p88, %p89
      %p91 = scmp.ne.s32.totalorder %s79, %s80
      %p92 = scmp.eq.s32.totalorder %s23, 1
      %p93 = por %p91, %p92
      %p95 = scmp.ne.s32.totalorder %s80, %s94
      %p96 = scmp.eq.s32.totalorder %s23, 0
      %p97 = por %p95, %p96
      %s99 = sadd.s32 %s98, 1
      %p102 = scmp.eq.s32.totalorder %s17, 1
      %p103 = scmp.ne.s32.totalorder %s98, %s100
      %p104 = scmp.eq.s32.totalorder %s17, 0
      %p105 = por %p103, %p104
      %p106 = scmp.ne.s32.totalorder %s98, %s100
      %p107 = scmp.eq.s32.totalorder %s22, 1
      %p108 = por %p106, %p107
      %p109 = scmp.ne.s32.totalorder %s100, %s101
      %p110 = scmp.eq.s32.totalorder %s22, 0
      %p111 = por %p109, %p110
      %p112 = scmp.ne.s32.totalorder %s100, %s101
      %p113 = scmp.eq.s32.totalorder %s23, 1
      %p114 = por %p112, %p113
      %p116 = scmp.ne.s32.totalorder %s101, %s115
      %p117 = scmp.eq.s32.totalorder %s23, 0
      %p118 = por %p116, %p117
      %s120 = sadd.s32 %s119, 1
      %p123 = scmp.eq.s32.totalorder %s17, 1
      %p124 = scmp.ne.s32.totalorder %s119, %s121
      %p125 = scmp.eq.s32.totalorder %s17, 0
      %p126 = por %p124, %p125
      %p127 = scmp.ne.s32.totalorder %s119, %s121
      %p128 = scmp.eq.s32.totalorder %s22, 1
      %p129 = por %p127, %p128
      %p130 = scmp.ne.s32.totalorder %s121, %s122
      %p131 = scmp.eq.s32.totalorder %s22, 0
      %p132 = por %p130, %p131
      %p133 = scmp.ne.s32.totalorder %s121, %s122
      %p134 = scmp.eq.s32.totalorder %s23, 1
      %p135 = por %p133, %p134
      %p137 = scmp.ne.s32.totalorder %s122, %s136
      %p138 = scmp.eq.s32.totalorder %s23, 0
      %p139 = por %p137, %p138
      %s141 = sadd.s32 %s140, 1
      %p144 = scmp.eq.s32.totalorder %s17, 1
      %p145 = scmp.ne.s32.totalorder %s140, %s142
      %p146 = scmp.eq.s32.totalorder %s17, 0
      %p147 = por %p145, %p146
      %p148 = scmp.ne.s32.totalorder %s140, %s142
      %p149 = scmp.eq.s32.totalorder %s22, 1
      %p150 = por %p148, %p149
      %p151 = scmp.ne.s32.totalorder %s142, %s143
      %p152 = scmp.eq.s32.totalorder %s22, 0
      %p153 = por %p151, %p152
      %p154 = scmp.ne.s32.totalorder %s142, %s143
      %p155 = scmp.eq.s32.totalorder %s23, 1
      %p156 = por %p154, %p155
      %p158 = scmp.ne.s32.totalorder %s143, %s157
      %p159 = scmp.eq.s32.totalorder %s23, 0
      %p160 = por %p158, %p159
      %s162 = sadd.s32 %s161, 1
      %p165 = scmp.eq.s32.totalorder %s17, 1
      %p166 = scmp.ne.s32.totalorder %s161, %s163
      %p167 = scmp.eq.s32.totalorder %s17, 0
      %p168 = por %p166, %p167
      %p169 = scmp.ne.s32.totalorder %s161, %s163
      %p170 = scmp.eq.s32.totalorder %s22, 1
      %p171 = por %p169, %p170
      %p172 = scmp.ne.s32.totalorder %s163, %s164
      %p173 = scmp.eq.s32.totalorder %s22, 0
      %p174 = por %p172, %p173
      %p175 = scmp.ne.s32.totalorder %s163, %s164
      %p176 = scmp.eq.s32.totalorder %s23, 1
      %p177 = por %p175, %p176
      %p179 = scmp.ne.s32.totalorder %s164, %s178
      %p180 = scmp.eq.s32.totalorder %s23, 0
      %p181 = por %p179, %p180
      %s183 = sadd.s32 %s182, 1
      %p186 = scmp.eq.s32.totalorder %s17, 1
      %p187 = scmp.ne.s32.totalorder %s182, %s184
      %p188 = scmp.eq.s32.totalorder %s17, 0
      %p189 = por %p187, %p188
      %p190 = scmp.ne.s32.totalorder %s182, %s184
      %p191 = scmp.eq.s32.totalorder %s22, 1
      %p192 = por %p190, %p191
      %p193 = scmp.ne.s32.totalorder %s184, %s185
      %p194 = scmp.eq.s32.totalorder %s22, 0
      %p195 = por %p193, %p194
      %p196 = scmp.ne.s32.totalorder %s184, %s185
      %p197 = scmp.eq.s32.totalorder %s23, 1
      %p198 = por %p196, %p197
      %p200 = scmp.ne.s32.totalorder %s185, %s199
      %p201 = scmp.eq.s32.totalorder %s23, 0
      %p202 = por %p200, %p201
      %s203 = ssub.s32 %s17, %s24
      %p204 = scmp.eq.s32.totalorder %s203, 0
      %s206 = sadd.s32 %s205, 1
      %s207 = scalar_select %p204, %s205, %s206
      %p210 = pneg %p204
      %p211 = scmp.eq.s32.totalorder %s17, 1
      %p212 = por %p210, %p211
      %p213 = scmp.ne.s32.totalorder %s205, %s208
      %p214 = scmp.eq.s32.totalorder %s17, 0
      %p215 = por %p213, %p214
      %p216 = scmp.ne.s32.totalorder %s205, %s208
      %p217 = scmp.eq.s32.totalorder %s22, 1
      %p218 = por %p216, %p217
      %p219 = scmp.ne.s32.totalorder %s208, %s209
      %p220 = scmp.eq.s32.totalorder %s22, 0
      %p221 = por %p219, %p220
      %p222 = scmp.ne.s32.totalorder %s208, %s209
      %p223 = scmp.eq.s32.totalorder %s23, 1
      %p224 = por %p222, %p223
      %p226 = scmp.ne.s32.totalorder %s209, %s225
      %p227 = scmp.eq.s32.totalorder %s23, 0
      %p228 = por %p226, %p227
      %p229 = scmp.le.s32.totalorder 1, %s17
      %p230 = scmp.lt.s32.totalorder %s17, 3
      %p231 = pnand %p229, %p230
      %p232 = pneg %p231
      // Predicated region
      $region9: #{tpu_custom_call.1} parent=5 // pred_check
        _
      $region10: #{tpu_custom_call.1} parent=5 // pred_check_branch
        %234 = sbr.rel (%p231) target = $region12
      $region11: #{tpu_custom_call.1} parent=5 // pred_region
        %s235 = ssub.s32 %s17, 1
        // Predicated region
        $region13: #{tpu_custom_call.1} parent=11 // pred_check
          %p236 = pneg %p90
        $region14: #{tpu_custom_call.1} parent=11 // pred_check_branch
          %238 = sbr.rel (%p236) target = $region16
        $region15: #{tpu_custom_call.1} parent=11 // pred_region
          _
        $region16: #{tpu_custom_call.1} parent=11 // pred_fallthru
          _
        // Predicated region
        $region17: #{tpu_custom_call.1} parent=11 // pred_check
          %p239 = pneg %p111
        $region18: #{tpu_custom_call.1} parent=11 // pred_check_branch
          %241 = sbr.rel (%p239) target = $region20
        $region19: #{tpu_custom_call.1} parent=11 // pred_region
          _
        $region20: #{tpu_custom_call.1} parent=11 // pred_fallthru
          _
        // Predicated region
        $region21: #{tpu_custom_call.1} parent=11 // pred_check
          %p242 = pneg %p132
        $region22: #{tpu_custom_call.1} parent=11 // pred_check_branch
          %244 = sbr.rel (%p242) target = $region24
        $region23: #{tpu_custom_call.1} parent=11 // pred_region
          _
        $region24: #{tpu_custom_call.1} parent=11 // pred_fallthru
          _
        // Predicated region
        $region25: #{tpu_custom_call.1} parent=11 // pred_check
          %p245 = pneg %p153
        $region26: #{tpu_custom_call.1} parent=11 // pred_check_branch
          %247 = sbr.rel (%p245) target = $region28
        $region27: #{tpu_custom_call.1} parent=11 // pred_region
          _
        $region28: #{tpu_custom_call.1} parent=11 // pred_fallthru
          _
        // Predicated region
        $region29: #{tpu_custom_call.1} parent=11 // pred_check
          %p248 = pneg %p174
        $region30: #{tpu_custom_call.1} parent=11 // pred_check_branch
          %250 = sbr.rel (%p248) target = $region32
        $region31: #{tpu_custom_call.1} parent=11 // pred_region
          _
        $region32: #{tpu_custom_call.1} parent=11 // pred_fallthru
          _
        // Predicated region
        $region33: #{tpu_custom_call.1} parent=11 // pred_check
          %p251 = pneg %p195
        $region34: #{tpu_custom_call.1} parent=11 // pred_check_branch
          %253 = sbr.rel (%p251) target = $region36
        $region35: #{tpu_custom_call.1} parent=11 // pred_region
          _
        $region36: #{tpu_custom_call.1} parent=11 // pred_fallthru
          _
      $region12: #{tpu_custom_call.1} parent=5 // pred_fallthru
        _
      %p254 = scmp.lt.s32.totalorder %s17, 2
      // Predicated region
      $region37: #{tpu_custom_call.1} parent=5 // pred_check
        %p255 = pneg %p254
      $region38: #{tpu_custom_call.1} parent=5 // pred_check_branch
        %257 = sbr.rel (%p255) target = $region40
      $region39: #{tpu_custom_call.1} parent=5 // pred_region
        // Predicated region
        $region41: #{tpu_custom_call.1} parent=39 // pred_check
          %p258 = pneg %p37
        $region42: #{tpu_custom_call.1} parent=39 // pred_check_branch
          %260 = sbr.rel (%p258) target = $region44
        $region43: #{tpu_custom_call.1} parent=39 // pred_region
          %p261 = scmp.lt.s32.totalorder %s17, 1
          %s262 = scalar_select %p261, %s17, 1
          %s263 = smul.addr %s262, 8
          %s264 = scalar_lea.vmem %s0, %s263
        $region44: #{tpu_custom_call.1} parent=39 // pred_fallthru
          _
        // Predicated region
        $region45: #{tpu_custom_call.1} parent=39 // pred_check
          %p265 = pneg %p63
        $region46: #{tpu_custom_call.1} parent=39 // pred_check_branch
          %267 = sbr.rel (%p265) target = $region48
        $region47: #{tpu_custom_call.1} parent=39 // pred_region
          %p268 = scmp.lt.s32.totalorder %s17, 1
          %s269 = scalar_select %p268, %s17, 1
          %s270 = smul.addr %s269, 2
          %s271 = smul.addr %s270, 8
          %s272 = scalar_lea.vmem %s1, %s271
        $region48: #{tpu_custom_call.1} parent=39 // pred_fallthru
          _
      $region40: #{tpu_custom_call.1} parent=5 // pred_fallthru
        _
      %p273 = scmp.le.s32.totalorder 1, %s17
      %p274 = scmp.lt.s32.totalorder %s17, 3
      %p275 = pnand %p273, %p274
      %p276 = pneg %p275
      // Predicated region
      $region49: #{tpu_custom_call.1} parent=5 // pred_check
        _
      $region50: #{tpu_custom_call.1} parent=5 // pred_check_branch
        %278 = sbr.rel (%p275) target = $region52
      $region51: #{tpu_custom_call.1} parent=5 // pred_region
        %s279 = ssub.s32 %s17, 1
        %p280 = scmp.lt.s32.totalorder %s22, 1
        %s281 = scalar_select %p280, %s22, 1
        %s282 = smul.addr %s281, 8
        %s283 = scalar_lea.vmem %s0, %s282
        %p284 = pneg %p43
        %p285 = pneg %p40
        %p286 = scmp.lt.s32.totalorder %s22, 1
        %s287 = scalar_select %p286, %s22, 1
        %s288 = smul.addr %s287, 2
        %s289 = smul.addr %s288, 8
        %s290 = scalar_lea.vmem %s1, %s289
        %p291 = pneg %p69
        %p292 = pneg %p66
        %p293 = pneg %p90
        %p294 = pneg %p87
        %p295 = pneg %p111
        %p296 = pneg %p108
        %p297 = pneg %p132
        %p298 = pneg %p129
        %p299 = pneg %p153
        %p300 = pneg %p150
        %p301 = pneg %p174
        %p302 = pneg %p171
        %p303 = pneg %p195
        %p304 = pneg %p192
        %p305 = pneg %p221
        %p306 = pneg %p218
        %s307 = sand.u32 %s208, 1
        %s308 = scalar_lea.sflag [#allocation5], %s307
        %s309 = sand.u32 %s208, 1
        %s310 = smul.addr %s309, 16
        %s311 = scalar_lea.vmem [#allocation4], %s310
        %p312 = scmp.lt.s32.totalorder %s22, 1
        %s313 = scalar_select %p312, %s22, 1
        %s314 = smul.addr %s313, 8
        %s315 = scalar_lea.vmem %s0, %s314
        %p316 = scmp.lt.s32.totalorder %s22, 1
        %s317 = scalar_select %p316, %s22, 1
        %s318 = smul.addr %s317, 2
        %s319 = smul.addr %s318, 8
        %s320 = scalar_lea.vmem %s1, %s319
        %321 = vst [vmem:[#allocation2] sm:$0x1] 0.0
        %322 = vst [vmem:[#allocation2 + $0x11] sm:$0x1] 0.0
        %vm323 = vcmask 516096
        %324 = vst.msk [vmem:[#allocation3] sm:$0x1] %vm323, 0.0
        %325 = vst.msk [vmem:[#allocation3 + $0x11] sm:$0x1] %vm323, 0.0
        %v326 = vld [vmem:[%s2] sm:$0xff]
        %v327 = vld [vmem:[%s2 + $0x8] sm:$0xff]
        %v328 = vld [vmem:[%s315] sm:$0xff]
        %vm329 = vcmask 64512
        %v331 = vsel %vm329, %v326, 0
        %v334 = vsel %vm329, %v327, 0
        %336 = vmatprep.subr.mxu0 0.0
        %337 = vmatpush1.msra.mxu0 %v328
        %338 = vmatprep.subr.mxu0 0.0
        %339 = vmatpush1.msra.mxu0 0.0
        %340 = vmatprep.subr.mxu0 0.0
        %341 = vmatpush1.msra.mxu0 0.0
        %342 = vmatprep.subr.mxu0 0.0
        %343 = vmatpush1.msra.mxu0 0.0
        %344 = vmatprep.subr.mxu0 0.0
        %345 = vmatpush1.msra.mxu0 0.0
        %346 = vmatprep.subr.mxu0 0.0
        %347 = vmatpush1.msra.mxu0 0.0
        %348 = vmatprep.subr.mxu0 0.0
        %349 = vmatpush1.msra.mxu0 0.0
        %350 = vmatprep.subr.mxu0 0.0
        %351 = vmatpush1.msra.mxu0 0.0
        %352 = vmatprep.subr.mxu0 0.0
        %353 = vmatpush1.msra.mxu0 0.0
        %354 = vmatprep.subr.mxu0 0.0
        %355 = vmatpush1.msra.mxu0 0.0
        %356 = vmatprep.subr.mxu0 0.0
        %357 = vmatpush1.msra.mxu0 0.0
        %358 = vmatprep.subr.mxu0 0.0
        %359 = vmatpush1.msra.mxu0 0.0
        %360 = vmatprep.subr.mxu0 0.0
        %361 = vmatpush1.msra.mxu0 0.0
        %362 = vmatprep.subr.mxu0 0.0
        %363 = vmatpush1.msra.mxu0 0.0
        %364 = vmatprep.subr.mxu0 0.0
        %365 = vmatpush1.msra.mxu0 0.0
        %366 = vmatprep.subr.mxu0 0.0
        %367 = vmatpush1.msra.mxu0 0.0
        %368 = vmatprep.subr.mxu0 0.0
        %369 = vmatpush1.msra.mxu0 0.0
        %370 = vmatprep.subr.mxu0 0.0
        %371 = vmatpush1.msra.mxu0 0.0
        %372 = vmatprep.subr.mxu0 0.0
        %373 = vmatpush1.msra.mxu0 0.0
        %374 = vmatprep.subr.mxu0 0.0
        %375 = vmatpush1.msra.mxu0 0.0
        %376 = vmatprep.subr.mxu0 0.0
        %377 = vmatpush1.msra.mxu0 0.0
        %378 = vmatprep.subr.mxu0 0.0
        %379 = vmatpush1.msra.mxu0 0.0
        %380 = vmatprep.subr.mxu0 0.0
        %381 = vmatpush1.msra.mxu0 0.0
        %382 = vmatprep.subr.mxu0 0.0
        %383 = vmatpush1.msra.mxu0 0.0
        %384 = vmatprep.subr.mxu0 0.0
        %385 = vmatpush1.msra.mxu0 0.0
        %386 = vmatprep.subr.mxu0 0.0
        %387 = vmatpush1.msra.mxu0 0.0
        %388 = vmatprep.subr.mxu0 0.0
        %389 = vmatpush1.msra.mxu0 0.0
        %390 = vmatprep.subr.mxu0 0.0
        %391 = vmatpush1.msra.mxu0 0.0
        %392 = vmatprep.subr.mxu0 0.0
        %393 = vmatpush1.msra.mxu0 0.0
        %394 = vmatprep.subr.mxu0 0.0
        %395 = vmatpush1.msra.mxu0 0.0
        %396 = vmatprep.subr.mxu0 0.0
        %397 = vmatpush1.msra.mxu0 0.0
        %398 = vmatprep.subr.mxu0 0.0
        %399 = vmatpush1.msra.mxu0 0.0
        %400 = vmatprep.mubr.f32.mxu0 0.0
        %401 = vmatmul.mubr.f32.gmra.mrb[0].mxu0 %v331
        %v402 = vpop.f32.mrb[0].mxu0
        %v403 = vadd.f32 0.0, %v402
        %v404 = vpop.f32.mrb[0].mxu0
        %405 = vmatprep.mubr.f32.mxu0 0.0
        %406 = vmatmul.mubr.f32.gmra.mrb[0].mxu0 %v334
        %v407 = vpop.f32.mrb[0].mxu0
        %v408 = vadd.f32 0.0, %v407
        %v409 = vpop.f32.mrb[0].mxu0
        %410 = vdwg.mxu0
        %v411 = vld [vmem:[%s3] sm:$0xff]
        %v412 = vld [vmem:[%s3 + $0x8] sm:$0xff]
        %v413 = vld [vmem:[%s3 + $0x10] sm:$0xff]
        %v414 = vld [vmem:[%s3 + $0x18] sm:$0xff]
        %vm415 = vcmask 261120
        %v417 = vsel %vm415, %v403, 0
        %v420 = vsel %vm415, %v408, 0
        %422 = vmatprep.subr.mxu0 0.0
        %423 = vmatpush1.msra.mxu0 %v411
        %424 = vmatprep.subr.mxu0 0.0
        %425 = vmatpush1.msra.mxu0 %v412
        %426 = vmatprep.subr.mxu0 0.0
        %427 = vmatpush1.msra.mxu0 %v413
        %428 = vmatprep.subr.mxu0 0.0
        %429 = vmatpush1.msra.mxu0 %v414
        %430 = vmatprep.subr.mxu0 0.0
        %431 = vmatpush1.msra.mxu0 0.0
        %432 = vmatprep.subr.mxu0 0.0
        %433 = vmatpush1.msra.mxu0 0.0
        %434 = vmatprep.subr.mxu0 0.0
        %435 = vmatpush1.msra.mxu0 0.0
        %436 = vmatprep.subr.mxu0 0.0
        %437 = vmatpush1.msra.mxu0 0.0
        %438 = vmatprep.subr.mxu0 0.0
        %439 = vmatpush1.msra.mxu0 0.0
        %440 = vmatprep.subr.mxu0 0.0
        %441 = vmatpush1.msra.mxu0 0.0
        %442 = vmatprep.subr.mxu0 0.0
        %443 = vmatpush1.msra.mxu0 0.0
        %444 = vmatprep.subr.mxu0 0.0
        %445 = vmatpush1.msra.mxu0 0.0
        %446 = vmatprep.subr.mxu0 0.0
        %447 = vmatpush1.msra.mxu0 0.0
        %448 = vmatprep.subr.mxu0 0.0
        %449 = vmatpush1.msra.mxu0 0.0
        %450 = vmatprep.subr.mxu0 0.0
        %451 = vmatpush1.msra.mxu0 0.0
        %452 = vmatprep.subr.mxu0 0.0
        %453 = vmatpush1.msra.mxu0 0.0
        %454 = vmatprep.subr.mxu0 0.0
        %455 = vmatpush1.msra.mxu0 0.0
        %456 = vmatprep.subr.mxu0 0.0
        %457 = vmatpush1.msra.mxu0 0.0
        %458 = vmatprep.subr.mxu0 0.0
        %459 = vmatpush1.msra.mxu0 0.0
        %460 = vmatprep.subr.mxu0 0.0
        %461 = vmatpush1.msra.mxu0 0.0
        %462 = vmatprep.subr.mxu0 0.0
        %463 = vmatpush1.msra.mxu0 0.0
        %464 = vmatprep.subr.mxu0 0.0
        %465 = vmatpush1.msra.mxu0 0.0
        %466 = vmatprep.subr.mxu0 0.0
        %467 = vmatpush1.msra.mxu0 0.0
        %468 = vmatprep.subr.mxu0 0.0
        %469 = vmatpush1.msra.mxu0 0.0
        %470 = vmatprep.subr.mxu0 0.0
        %471 = vmatpush1.msra.mxu0 0.0
        %472 = vmatprep.subr.mxu0 0.0
        %473 = vmatpush1.msra.mxu0 0.0
        %474 = vmatprep.subr.mxu0 0.0
        %475 = vmatpush1.msra.mxu0 0.0
        %476 = vmatprep.subr.mxu0 0.0
        %477 = vmatpush1.msra.mxu0 0.0
        %478 = vmatprep.subr.mxu0 0.0
        %479 = vmatpush1.msra.mxu0 0.0
        %480 = vmatprep.subr.mxu0 0.0
        %481 = vmatpush1.msra.mxu0 0.0
        %482 = vmatprep.subr.mxu0 0.0
        %483 = vmatpush1.msra.mxu0 0.0
        %484 = vmatprep.subr.mxu0 0.0
        %485 = vmatpush1.msra.mxu0 0.0
        %486 = vmatprep.mubr.f32.mxu0 0.0
        %487 = vmatmul.mubr.f32.gmra.mrb[0].mxu0 %v417
        %v488 = vpop.f32.mrb[0].mxu0
        %v489 = vadd.f32 0.0, %v488
        %v490 = vpop.f32.mrb[0].mxu0
        %491 = vmatprep.mubr.f32.mxu0 0.0
        %492 = vmatmul.mubr.f32.gmra.mrb[0].mxu0 %v420
        %v493 = vpop.f32.mrb[0].mxu0
        %v494 = vadd.f32 0.0, %v493
        %v495 = vpop.f32.mrb[0].mxu0
        %496 = vdwg.mxu0
        %v497 = vld [vmem:[%s320] sm:$0xff]
        %v498 = vld [vmem:[%s320 + $0x8] sm:$0xff]
        %vm499 = vcmask 523264
        %500 = vst.msk [vmem:[#allocation2 + $0x1] sm:$0xff] %vm499, %v497
        %501 = vst.msk [vmem:[#allocation2 + $0x9] sm:$0xff] %vm499, %v498
        %504 = vrot.lane.b32.xlu0 %v489, 64
        %v505 = vpop.permute.xlu0 %504
        %506 = vrot.lane.b32.xlu0 %v494, 64
        %v507 = vpop.permute.xlu0 %506
        %vm510 = vcmask 1048064
        %511 = vst.msk [vmem:[#allocation2 + $0x1] sm:$0xff] %vm510, %v505
        %512 = vst.msk [vmem:[#allocation2 + $0x9] sm:$0xff] %vm510, %v507
        %v513 = vld [vmem:[#allocation2] sm:$0xff]
        %v514 = vld [vmem:[#allocation2 + $0x8] sm:$0xff]
        %v515 = vld [vmem:[%s4] sm:$0xff]
        %v516 = vld [vmem:[%s4 + $0x8] sm:$0xff]
        %v517 = vld [vmem:[%s4 + $0x10] sm:$0xff]
        %v518 = vld [vmem:[%s4 + $0x18] sm:$0xff]
        %v519 = vld [vmem:[%s4 + $0x20] sm:$0xff]
        %v520 = vld [vmem:[%s4 + $0x28] sm:$0xff]
        %v521 = vld [vmem:[%s4 + $0x30] sm:$0xff]
        %v522 = vld [vmem:[%s4 + $0x38] sm:$0xff]
        %v523 = vld [vmem:[%s4 + $0x40] sm:$0xff]
        %v524 = vld [vmem:[%s4 + $0x48] sm:$0xff]
        %v525 = vld [vmem:[%s4 + $0x50] sm:$0xff]
        %v526 = vld [vmem:[%s4 + $0x58] sm:$0xff]
        %v527 = vld [vmem:[%s4 + $0x60] sm:$0xff]
        %v528 = vld [vmem:[%s4 + $0x68] sm:$0xff]
        %v529 = vld [vmem:[%s4 + $0x70] sm:$0xff]
        %v530 = vld [vmem:[%s4 + $0x78] sm:$0xff]
        %v531 = vld [vmem:[#allocation2 + $0x1] sm:$0xff]
        %v532 = vld [vmem:[#allocation2 + $0x9] sm:$0xff]
        %s533 = scalar_lea.vmem %s4, 128
        %v534 = vld [vmem:[%s533] sm:$0xff]
        %v535 = vld [vmem:[%s533 + $0x8] sm:$0xff]
        %v536 = vld [vmem:[%s533 + $0x10] sm:$0xff]
        %v537 = vld [vmem:[%s533 + $0x18] sm:$0xff]
        %v538 = vld [vmem:[%s533 + $0x20] sm:$0xff]
        %v539 = vld [vmem:[%s533 + $0x28] sm:$0xff]
        %v540 = vld [vmem:[%s533 + $0x30] sm:$0xff]
        %v541 = vld [vmem:[%s533 + $0x38] sm:$0xff]
        %v542 = vld [vmem:[%s533 + $0x40] sm:$0xff]
        %v543 = vld [vmem:[%s533 + $0x48] sm:$0xff]
        %v544 = vld [vmem:[%s533 + $0x50] sm:$0xff]
        %v545 = vld [vmem:[%s533 + $0x58] sm:$0xff]
        %v546 = vld [vmem:[%s533 + $0x60] sm:$0xff]
        %v547 = vld [vmem:[%s533 + $0x68] sm:$0xff]
        %v548 = vld [vmem:[%s533 + $0x70] sm:$0xff]
        %v549 = vld [vmem:[%s533 + $0x78] sm:$0xff]
        %550 = vmatprep.subr.mxu0 0.0
        %551 = vmatpush1.msra.mxu0 %v534
        %552 = vmatprep.subr.mxu0 0.0
        %553 = vmatpush1.msra.mxu0 %v535
        %554 = vmatprep.subr.mxu0 0.0
        %555 = vmatpush1.msra.mxu0 %v536
        %556 = vmatprep.subr.mxu0 0.0
        %557 = vmatpush1.msra.mxu0 %v537
        %558 = vmatprep.subr.mxu0 0.0
        %559 = vmatpush1.msra.mxu0 %v538
        %560 = vmatprep.subr.mxu0 0.0
        %561 = vmatpush1.msra.mxu0 %v539
        %562 = vmatprep.subr.mxu0 0.0
        %563 = vmatpush1.msra.mxu0 %v540
        %564 = vmatprep.subr.mxu0 0.0
        %565 = vmatpush1.msra.mxu0 %v541
        %566 = vmatprep.subr.mxu0 0.0
        %567 = vmatpush1.msra.mxu0 %v542
        %568 = vmatprep.subr.mxu0 0.0
        %569 = vmatpush1.msra.mxu0 %v543
        %570 = vmatprep.subr.mxu0 0.0
        %571 = vmatpush1.msra.mxu0 %v544
        %572 = vmatprep.subr.mxu0 0.0
        %573 = vmatpush1.msra.mxu0 %v545
        %574 = vmatprep.subr.mxu0 0.0
        %575 = vmatpush1.msra.mxu0 %v546
        %576 = vmatprep.subr.mxu0 0.0
        %577 = vmatpush1.msra.mxu0 %v547
        %578 = vmatprep.subr.mxu0 0.0
        %579 = vmatpush1.msra.mxu0 %v548
        %580 = vmatprep.subr.mxu0 0.0
        %581 = vmatpush1.msra.mxu0 %v549
        %582 = vmatprep.subr.mxu0 0.0
        %583 = vmatpush1.msra.mxu0 0.0
        %584 = vmatprep.subr.mxu0 0.0
        %585 = vmatpush1.msra.mxu0 0.0
        %586 = vmatprep.subr.mxu0 0.0
        %587 = vmatpush1.msra.mxu0 0.0
        %588 = vmatprep.subr.mxu0 0.0
        %589 = vmatpush1.msra.mxu0 0.0
        %590 = vmatprep.subr.mxu0 0.0
        %591 = vmatpush1.msra.mxu0 0.0
        %592 = vmatprep.subr.mxu0 0.0
        %593 = vmatpush1.msra.mxu0 0.0
        %594 = vmatprep.subr.mxu0 0.0
        %595 = vmatpush1.msra.mxu0 0.0
        %596 = vmatprep.subr.mxu0 0.0
        %597 = vmatpush1.msra.mxu0 0.0
        %598 = vmatprep.subr.mxu0 0.0
        %599 = vmatpush1.msra.mxu0 0.0
        %600 = vmatprep.subr.mxu0 0.0
        %601 = vmatpush1.msra.mxu0 0.0
        %602 = vmatprep.subr.mxu0 0.0
        %603 = vmatpush1.msra.mxu0 0.0
        %604 = vmatprep.subr.mxu0 0.0
        %605 = vmatpush1.msra.mxu0 0.0
        %606 = vmatprep.subr.mxu0 0.0
        %607 = vmatpush1.msra.mxu0 0.0
        %608 = vmatprep.subr.mxu0 0.0
        %609 = vmatpush1.msra.mxu0 0.0
        %610 = vmatprep.subr.mxu0 0.0
        %611 = vmatpush1.msra.mxu0 0.0
        %612 = vmatprep.subr.mxu0 0.0
        %613 = vmatpush1.msra.mxu0 0.0
        %614 = vmatprep.mubr.f32.mxu0 0.0
        %615 = vmatmul.mubr.f32.gmra.mrb[0].mxu0 %v531
        %v616 = vpop.f32.mrb[0].mxu0
        %v617 = vadd.f32 0.0, %v616
        %v618 = vpop.f32.mrb[0].mxu0
        %619 = vmatprep.mubr.f32.mxu0 0.0
        %620 = vmatmul.mubr.f32.gmra.mrb[0].mxu0 %v532
        %v621 = vpop.f32.mrb[0].mxu0
        %v622 = vadd.f32 0.0, %v621
        %v623 = vpop.f32.mrb[0].mxu0
        %624 = vdwg.mxu0
        %625 = vmatprep.subr.mxu0 0.0
        %626 = vmatpush1.msra.mxu0 %v515
        %627 = vmatprep.subr.mxu0 0.0
        %628 = vmatpush1.msra.mxu0 %v516
        %629 = vmatprep.subr.mxu0 0.0
        %630 = vmatpush1.msra.mxu0 %v517
        %631 = vmatprep.subr.mxu0 0.0
        %632 = vmatpush1.msra.mxu0 %v518
        %633 = vmatprep.subr.mxu0 0.0
        %634 = vmatpush1.msra.mxu0 %v519
        %635 = vmatprep.subr.mxu0 0.0
        %636 = vmatpush1.msra.mxu0 %v520
        %637 = vmatprep.subr.mxu0 0.0
        %638 = vmatpush1.msra.mxu0 %v521
        %639 = vmatprep.subr.mxu0 0.0
        %640 = vmatpush1.msra.mxu0 %v522
        %641 = vmatprep.subr.mxu0 0.0
        %642 = vmatpush1.msra.mxu0 %v523
        %643 = vmatprep.subr.mxu0 0.0
        %644 = vmatpush1.msra.mxu0 %v524
        %645 = vmatprep.subr.mxu0 0.0
        %646 = vmatpush1.msra.mxu0 %v525
        %647 = vmatprep.subr.mxu0 0.0
        %648 = vmatpush1.msra.mxu0 %v526
        %649 = vmatprep.subr.mxu0 0.0
        %650 = vmatpush1.msra.mxu0 %v527
        %651 = vmatprep.subr.mxu0 0.0
        %652 = vmatpush1.msra.mxu0 %v528
        %653 = vmatprep.subr.mxu0 0.0
        %654 = vmatpush1.msra.mxu0 %v529
        %655 = vmatprep.subr.mxu0 0.0
        %656 = vmatpush1.msra.mxu0 %v530
        %657 = vmatprep.subr.mxu0 0.0
        %658 = vmatpush1.msra.mxu0 0.0
        %659 = vmatprep.subr.mxu0 0.0
        %660 = vmatpush1.msra.mxu0 0.0
        %661 = vmatprep.subr.mxu0 0.0
        %662 = vmatpush1.msra.mxu0 0.0
        %663 = vmatprep.subr.mxu0 0.0
        %664 = vmatpush1.msra.mxu0 0.0
        %665 = vmatprep.subr.mxu0 0.0
        %666 = vmatpush1.msra.mxu0 0.0
        %667 = vmatprep.subr.mxu0 0.0
        %668 = vmatpush1.msra.mxu0 0.0
        %669 = vmatprep.subr.mxu0 0.0
        %670 = vmatpush1.msra.mxu0 0.0
        %671 = vmatprep.subr.mxu0 0.0
        %672 = vmatpush1.msra.mxu0 0.0
        %673 = vmatprep.subr.mxu0 0.0
        %674 = vmatpush1.msra.mxu0 0.0
        %675 = vmatprep.subr.mxu0 0.0
        %676 = vmatpush1.msra.mxu0 0.0
        %677 = vmatprep.subr.mxu0 0.0
        %678 = vmatpush1.msra.mxu0 0.0
        %679 = vmatprep.subr.mxu0 0.0
        %680 = vmatpush1.msra.mxu0 0.0
        %681 = vmatprep.subr.mxu0 0.0
        %682 = vmatpush1.msra.mxu0 0.0
        %683 = vmatprep.subr.mxu0 0.0
        %684 = vmatpush1.msra.mxu0 0.0
        %685 = vmatprep.subr.mxu0 0.0
        %686 = vmatpush1.msra.mxu0 0.0
        %687 = vmatprep.subr.mxu0 0.0
        %688 = vmatpush1.msra.mxu0 0.0
        %689 = vmatprep.mubr.f32.mxu0 0.0
        %690 = vmatmul.mubr.f32.gmra.mrb[0].mxu0 %v513
        %v691 = vpop.f32.mrb[0].mxu0
        %v692 = vadd.f32 %v617, %v691
        %v693 = vpop.f32.mrb[0].mxu0
        %694 = vmatprep.mubr.f32.mxu0 0.0
        %695 = vmatmul.mubr.f32.gmra.mrb[0].mxu0 %v514
        %v696 = vpop.f32.mrb[0].mxu0
        %v697 = vadd.f32 %v622, %v696
        %v698 = vpop.f32.mrb[0].mxu0
        %699 = vdwg.mxu0
        %v700 = vld [vmem:[#allocation2 + $0x2] sm:$0xff]
        %v701 = vld [vmem:[#allocation2 + $0xa] sm:$0xff]
        %s702 = scalar_lea.vmem %s4, 256
        %v703 = vld [vmem:[%s702] sm:$0xff]
        %v704 = vld [vmem:[%s702 + $0x8] sm:$0xff]
        %v705 = vld [vmem:[%s702 + $0x10] sm:$0xff]
        %v706 = vld [vmem:[%s702 + $0x18] sm:$0xff]
        %v707 = vld [vmem:[%s702 + $0x20] sm:$0xff]
        %v708 = vld [vmem:[%s702 + $0x28] sm:$0xff]
        %v709 = vld [vmem:[%s702 + $0x30] sm:$0xff]
        %v710 = vld [vmem:[%s702 + $0x38] sm:$0xff]
        %v711 = vld [vmem:[%s702 + $0x40] sm:$0xff]
        %v712 = vld [vmem:[%s702 + $0x48] sm:$0xff]
        %v713 = vld [vmem:[%s702 + $0x50] sm:$0xff]
        %v714 = vld [vmem:[%s702 + $0x58] sm:$0xff]
        %v715 = vld [vmem:[%s702 + $0x60] sm:$0xff]
        %v716 = vld [vmem:[%s702 + $0x68] sm:$0xff]
        %v717 = vld [vmem:[%s702 + $0x70] sm:$0xff]
        %v718 = vld [vmem:[%s702 + $0x78] sm:$0xff]
        %719 = vmatprep.subr.mxu0 0.0
        %720 = vmatpush1.msra.mxu0 %v703
        %721 = vmatprep.subr.mxu0 0.0
        %722 = vmatpush1.msra.mxu0 %v704
        %723 = vmatprep.subr.mxu0 0.0
        %724 = vmatpush1.msra.mxu0 %v705
        %725 = vmatprep.subr.mxu0 0.0
        %726 = vmatpush1.msra.mxu0 %v706
        %727 = vmatprep.subr.mxu0 0.0
        %728 = vmatpush1.msra.mxu0 %v707
        %729 = vmatprep.subr.mxu0 0.0
        %730 = vmatpush1.msra.mxu0 %v708
        %731 = vmatprep.subr.mxu0 0.0
        %732 = vmatpush1.msra.mxu0 %v709
        %733 = vmatprep.subr.mxu0 0.0
        %734 = vmatpush1.msra.mxu0 %v710
        %735 = vmatprep.subr.mxu0 0.0
        %736 = vmatpush1.msra.mxu0 %v711
        %737 = vmatprep.subr.mxu0 0.0
        %738 = vmatpush1.msra.mxu0 %v712
        %739 = vmatprep.subr.mxu0 0.0
        %740 = vmatpush1.msra.mxu0 %v713
        %741 = vmatprep.subr.mxu0 0.0
        %742 = vmatpush1.msra.mxu0 %v714
        %743 = vmatprep.subr.mxu0 0.0
        %744 = vmatpush1.msra.mxu0 %v715
        %745 = vmatprep.subr.mxu0 0.0
        %746 = vmatpush1.msra.mxu0 %v716
        %747 = vmatprep.subr.mxu0 0.0
        %748 = vmatpush1.msra.mxu0 %v717
        %749 = vmatprep.subr.mxu0 0.0
        %750 = vmatpush1.msra.mxu0 %v718
        %751 = vmatprep.subr.mxu0 0.0
        %752 = vmatpush1.msra.mxu0 0.0
        %753 = vmatprep.subr.mxu0 0.0
        %754 = vmatpush1.msra.mxu0 0.0
        %755 = vmatprep.subr.mxu0 0.0
        %756 = vmatpush1.msra.mxu0 0.0
        %757 = vmatprep.subr.mxu0 0.0
        %758 = vmatpush1.msra.mxu0 0.0
        %759 = vmatprep.subr.mxu0 0.0
        %760 = vmatpush1.msra.mxu0 0.0
        %761 = vmatprep.subr.mxu0 0.0
        %762 = vmatpush1.msra.mxu0 0.0
        %763 = vmatprep.subr.mxu0 0.0
        %764 = vmatpush1.msra.mxu0 0.0
        %765 = vmatprep.subr.mxu0 0.0
        %766 = vmatpush1.msra.mxu0 0.0
        %767 = vmatprep.subr.mxu0 0.0
        %768 = vmatpush1.msra.mxu0 0.0
        %769 = vmatprep.subr.mxu0 0.0
        %770 = vmatpush1.msra.mxu0 0.0
        %771 = vmatprep.subr.mxu0 0.0
        %772 = vmatpush1.msra.mxu0 0.0
        %773 = vmatprep.subr.mxu0 0.0
        %774 = vmatpush1.msra.mxu0 0.0
        %775 = vmatprep.subr.mxu0 0.0
        %776 = vmatpush1.msra.mxu0 0.0
        %777 = vmatprep.subr.mxu0 0.0
        %778 = vmatpush1.msra.mxu0 0.0
        %779 = vmatprep.subr.mxu0 0.0
        %780 = vmatpush1.msra.mxu0 0.0
        %781 = vmatprep.subr.mxu0 0.0
        %782 = vmatpush1.msra.mxu0 0.0
        %783 = vmatprep.mubr.f32.mxu0 0.0
        %784 = vmatmul.mubr.f32.gmra.mrb[0].mxu0 %v700
        %v785 = vpop.f32.mrb[0].mxu0
        %v786 = vadd.f32 0.0, %v785
        %v787 = vpop.f32.mrb[0].mxu0
        %788 = vmatprep.mubr.f32.mxu0 0.0
        %789 = vmatmul.mubr.f32.gmra.mrb[0].mxu0 %v701
        %v790 = vpop.f32.mrb[0].mxu0
        %v791 = vadd.f32 0.0, %v790
        %v792 = vpop.f32.mrb[0].mxu0
        %793 = vdwg.mxu0
        %v794 = vadd.f32 %v692, %v786
        %v795 = vadd.f32 %v697, %v791
        %v796 = vld [vmem:[%s5] sm:$0x1]
        %v798 = vlaneseq
        %v799 = vshrl.u32 %v798, 7
        %v800 = vsub.s32 0, %v799
        %v801 = vrot.slane %v796, %v800
        %v803 = vadd.f32 %v794, %v801
        %v804 = vadd.f32 %v795, %v801
        %v805 = vmax.f32 %v803, 0.0
        %v806 = vmax.f32 %v804, 0.0
        %807 = vst.msk [vmem:[#allocation3 + $0x1] sm:$0xff] %vm499, %v805
        %808 = vst.msk [vmem:[#allocation3 + $0x9] sm:$0xff] %vm499, %v806
        %v809 = vld [vmem:[#allocation3] sm:$0xff]
        %v810 = vld [vmem:[#allocation3 + $0x8] sm:$0xff]
        %v811 = vld [vmem:[%s6] sm:$0xff]
        %v812 = vld [vmem:[%s6 + $0x8] sm:$0xff]
        %v813 = vld [vmem:[%s6 + $0x10] sm:$0xff]
        %v814 = vld [vmem:[%s6 + $0x18] sm:$0xff]
        %v815 = vld [vmem:[%s6 + $0x20] sm:$0xff]
        %v816 = vld [vmem:[%s6 + $0x28] sm:$0xff]
        %v817 = vld [vmem:[%s6 + $0x30] sm:$0xff]
        %v818 = vld [vmem:[%s6 + $0x38] sm:$0xff]
        %v819 = vld [vmem:[#allocation3 + $0x1] sm:$0xff]
        %v820 = vld [vmem:[#allocation3 + $0x9] sm:$0xff]
        %s821 = scalar_lea.vmem %s6, 64
        %v822 = vld [vmem:[%s821] sm:$0xff]
        %v823 = vld [vmem:[%s821 + $0x8] sm:$0xff]
        %v824 = vld [vmem:[%s821 + $0x10] sm:$0xff]
        %v825 = vld [vmem:[%s821 + $0x18] sm:$0xff]
        %v826 = vld [vmem:[%s821 + $0x20] sm:$0xff]
        %v827 = vld [vmem:[%s821 + $0x28] sm:$0xff]
        %v828 = vld [vmem:[%s821 + $0x30] sm:$0xff]
        %v829 = vld [vmem:[%s821 + $0x38] sm:$0xff]
        %v831 = vsel %vm499, %v819, 0
        %v834 = vsel %vm499, %v820, 0
        %836 = vmatprep.subr.mxu0 0.0
        %837 = vmatpush1.msra.mxu0 %v822
        %838 = vmatprep.subr.mxu0 0.0
        %839 = vmatpush1.msra.mxu0 %v823
        %840 = vmatprep.subr.mxu0 0.0
        %841 = vmatpush1.msra.mxu0 %v824
        %842 = vmatprep.subr.mxu0 0.0
        %843 = vmatpush1.msra.mxu0 %v825
        %844 = vmatprep.subr.mxu0 0.0
        %845 = vmatpush1.msra.mxu0 %v826
        %846 = vmatprep.subr.mxu0 0.0
        %847 = vmatpush1.msra.mxu0 %v827
        %848 = vmatprep.subr.mxu0 0.0
        %849 = vmatpush1.msra.mxu0 %v828
        %850 = vmatprep.subr.mxu0 0.0
        %851 = vmatpush1.msra.mxu0 %v829
        %852 = vmatprep.subr.mxu0 0.0
        %853 = vmatpush1.msra.mxu0 0.0
        %854 = vmatprep.subr.mxu0 0.0
        %855 = vmatpush1.msra.mxu0 0.0
        %856 = vmatprep.subr.mxu0 0.0
        %857 = vmatpush1.msra.mxu0 0.0
        %858 = vmatprep.subr.mxu0 0.0
        %859 = vmatpush1.msra.mxu0 0.0
        %860 = vmatprep.subr.mxu0 0.0
        %861 = vmatpush1.msra.mxu0 0.0
        %862 = vmatprep.subr.mxu0 0.0
        %863 = vmatpush1.msra.mxu0 0.0
        %864 = vmatprep.subr.mxu0 0.0
        %865 = vmatpush1.msra.mxu0 0.0
        %866 = vmatprep.subr.mxu0 0.0
        %867 = vmatpush1.msra.mxu0 0.0
        %868 = vmatprep.subr.mxu0 0.0
        %869 = vmatpush1.msra.mxu0 0.0
        %870 = vmatprep.subr.mxu0 0.0
        %871 = vmatpush1.msra.mxu0 0.0
        %872 = vmatprep.subr.mxu0 0.0
        %873 = vmatpush1.msra.mxu0 0.0
        %874 = vmatprep.subr.mxu0 0.0
        %875 = vmatpush1.msra.mxu0 0.0
        %876 = vmatprep.subr.mxu0 0.0
        %877 = vmatpush1.msra.mxu0 0.0
        %878 = vmatprep.subr.mxu0 0.0
        %879 = vmatpush1.msra.mxu0 0.0
        %880 = vmatprep.subr.mxu0 0.0
        %881 = vmatpush1.msra.mxu0 0.0
        %882 = vmatprep.subr.mxu0 0.0
        %883 = vmatpush1.msra.mxu0 0.0
        %884 = vmatprep.subr.mxu0 0.0
        %885 = vmatpush1.msra.mxu0 0.0
        %886 = vmatprep.subr.mxu0 0.0
        %887 = vmatpush1.msra.mxu0 0.0
        %888 = vmatprep.subr.mxu0 0.0
        %889 = vmatpush1.msra.mxu0 0.0
        %890 = vmatprep.subr.mxu0 0.0
        %891 = vmatpush1.msra.mxu0 0.0
        %892 = vmatprep.subr.mxu0 0.0
        %893 = vmatpush1.msra.mxu0 0.0
        %894 = vmatprep.subr.mxu0 0.0
        %895 = vmatpush1.msra.mxu0 0.0
        %896 = vmatprep.subr.mxu0 0.0
        %897 = vmatpush1.msra.mxu0 0.0
        %898 = vmatprep.subr.mxu0 0.0
        %899 = vmatpush1.msra.mxu0 0.0
        %900 = vmatprep.mubr.f32.mxu0 0.0
        %901 = vmatmul.mubr.f32.gmra.mrb[0].mxu0 %v831
        %v902 = vpop.f32.mrb[0].mxu0
        %v903 = vadd.f32 0.0, %v902
        %v904 = vpop.f32.mrb[0].mxu0
        %905 = vmatprep.mubr.f32.mxu0 0.0
        %906 = vmatmul.mubr.f32.gmra.mrb[0].mxu0 %v834
        %v907 = vpop.f32.mrb[0].mxu0
        %v908 = vadd.f32 0.0, %v907
        %v909 = vpop.f32.mrb[0].mxu0
        %910 = vdwg.mxu0
        %v912 = vsel %vm499, %v809, 0
        %v915 = vsel %vm499, %v810, 0
        %917 = vmatprep.subr.mxu0 0.0
        %918 = vmatpush1.msra.mxu0 %v811
        %919 = vmatprep.subr.mxu0 0.0
        %920 = vmatpush1.msra.mxu0 %v812
        %921 = vmatprep.subr.mxu0 0.0
        %922 = vmatpush1.msra.mxu0 %v813
        %923 = vmatprep.subr.mxu0 0.0
        %924 = vmatpush1.msra.mxu0 %v814
        %925 = vmatprep.subr.mxu0 0.0
        %926 = vmatpush1.msra.mxu0 %v815
        %927 = vmatprep.subr.mxu0 0.0
        %928 = vmatpush1.msra.mxu0 %v816
        %929 = vmatprep.subr.mxu0 0.0
        %930 = vmatpush1.msra.mxu0 %v817
        %931 = vmatprep.subr.mxu0 0.0
        %932 = vmatpush1.msra.mxu0 %v818
        %933 = vmatprep.subr.mxu0 0.0
        %934 = vmatpush1.msra.mxu0 0.0
        %935 = vmatprep.subr.mxu0 0.0
        %936 = vmatpush1.msra.mxu0 0.0
        %937 = vmatprep.subr.mxu0 0.0
        %938 = vmatpush1.msra.mxu0 0.0
        %939 = vmatprep.subr.mxu0 0.0
        %940 = vmatpush1.msra.mxu0 0.0
        %941 = vmatprep.subr.mxu0 0.0
        %942 = vmatpush1.msra.mxu0 0.0
        %943 = vmatprep.subr.mxu0 0.0
        %944 = vmatpush1.msra.mxu0 0.0
        %945 = vmatprep.subr.mxu0 0.0
        %946 = vmatpush1.msra.mxu0 0.0
        %947 = vmatprep.subr.mxu0 0.0
        %948 = vmatpush1.msra.mxu0 0.0
        %949 = vmatprep.subr.mxu0 0.0
        %950 = vmatpush1.msra.mxu0 0.0
        %951 = vmatprep.subr.mxu0 0.0
        %952 = vmatpush1.msra.mxu0 0.0
        %953 = vmatprep.subr.mxu0 0.0
        %954 = vmatpush1.msra.mxu0 0.0
        %955 = vmatprep.subr.mxu0 0.0
        %956 = vmatpush1.msra.mxu0 0.0
        %957 = vmatprep.subr.mxu0 0.0
        %958 = vmatpush1.msra.mxu0 0.0
        %959 = vmatprep.subr.mxu0 0.0
        %960 = vmatpush1.msra.mxu0 0.0
        %961 = vmatprep.subr.mxu0 0.0
        %962 = vmatpush1.msra.mxu0 0.0
        %963 = vmatprep.subr.mxu0 0.0
        %964 = vmatpush1.msra.mxu0 0.0
        %965 = vmatprep.subr.mxu0 0.0
        %966 = vmatpush1.msra.mxu0 0.0
        %967 = vmatprep.subr.mxu0 0.0
        %968 = vmatpush1.msra.mxu0 0.0
        %969 = vmatprep.subr.mxu0 0.0
        %970 = vmatpush1.msra.mxu0 0.0
        %971 = vmatprep.subr.mxu0 0.0
        %972 = vmatpush1.msra.mxu0 0.0
        %973 = vmatprep.subr.mxu0 0.0
        %974 = vmatpush1.msra.mxu0 0.0
        %975 = vmatprep.subr.mxu0 0.0
        %976 = vmatpush1.msra.mxu0 0.0
        %977 = vmatprep.subr.mxu0 0.0
        %978 = vmatpush1.msra.mxu0 0.0
        %979 = vmatprep.subr.mxu0 0.0
        %980 = vmatpush1.msra.mxu0 0.0
        %981 = vmatprep.mubr.f32.mxu0 0.0
        %982 = vmatmul.mubr.f32.gmra.mrb[0].mxu0 %v912
        %v983 = vpop.f32.mrb[0].mxu0
        %v984 = vadd.f32 %v903, %v983
        %v985 = vpop.f32.mrb[0].mxu0
        %986 = vmatprep.mubr.f32.mxu0 0.0
        %987 = vmatmul.mubr.f32.gmra.mrb[0].mxu0 %v915
        %v988 = vpop.f32.mrb[0].mxu0
        %v989 = vadd.f32 %v908, %v988
        %v990 = vpop.f32.mrb[0].mxu0
        %991 = vdwg.mxu0
        %v992 = vld [vmem:[#allocation3 + $0x2] sm:$0xff]
        %v993 = vld [vmem:[#allocation3 + $0xa] sm:$0xff]
        %s994 = scalar_lea.vmem %s6, 128
        %v995 = vld [vmem:[%s994] sm:$0xff]
        %v996 = vld [vmem:[%s994 + $0x8] sm:$0xff]
        %v997 = vld [vmem:[%s994 + $0x10] sm:$0xff]
        %v998 = vld [vmem:[%s994 + $0x18] sm:$0xff]
        %v999 = vld [vmem:[%s994 + $0x20] sm:$0xff]
        %v1000 = vld [vmem:[%s994 + $0x28] sm:$0xff]
        %v1001 = vld [vmem:[%s994 + $0x30] sm:$0xff]
        %v1002 = vld [vmem:[%s994 + $0x38] sm:$0xff]
        %v1004 = vsel %vm499, %v992, 0
        %v1007 = vsel %vm499, %v993, 0
        %1009 = vmatprep.subr.mxu0 0.0
        %1010 = vmatpush1.msra.mxu0 %v995
        %1011 = vmatprep.subr.mxu0 0.0
        %1012 = vmatpush1.msra.mxu0 %v996
        %1013 = vmatprep.subr.mxu0 0.0
        %1014 = vmatpush1.msra.mxu0 %v997
        %1015 = vmatprep.subr.mxu0 0.0
        %1016 = vmatpush1.msra.mxu0 %v998
        %1017 = vmatprep.subr.mxu0 0.0
        %1018 = vmatpush1.msra.mxu0 %v999
        %1019 = vmatprep.subr.mxu0 0.0
        %1020 = vmatpush1.msra.mxu0 %v1000
        %1021 = vmatprep.subr.mxu0 0.0
        %1022 = vmatpush1.msra.mxu0 %v1001
        %1023 = vmatprep.subr.mxu0 0.0
        %1024 = vmatpush1.msra.mxu0 %v1002
        %1025 = vmatprep.subr.mxu0 0.0
        %1026 = vmatpush1.msra.mxu0 0.0
        %1027 = vmatprep.subr.mxu0 0.0
        %1028 = vmatpush1.msra.mxu0 0.0
        %1029 = vmatprep.subr.mxu0 0.0
        %1030 = vmatpush1.msra.mxu0 0.0
        %1031 = vmatprep.subr.mxu0 0.0
        %1032 = vmatpush1.msra.mxu0 0.0
        %1033 = vmatprep.subr.mxu0 0.0
        %1034 = vmatpush1.msra.mxu0 0.0
        %1035 = vmatprep.subr.mxu0 0.0
        %1036 = vmatpush1.msra.mxu0 0.0
        %1037 = vmatprep.subr.mxu0 0.0
        %1038 = vmatpush1.msra.mxu0 0.0
        %1039 = vmatprep.subr.mxu0 0.0
        %1040 = vmatpush1.msra.mxu0 0.0
        %1041 = vmatprep.subr.mxu0 0.0
        %1042 = vmatpush1.msra.mxu0 0.0
        %1043 = vmatprep.subr.mxu0 0.0
        %1044 = vmatpush1.msra.mxu0 0.0
        %1045 = vmatprep.subr.mxu0 0.0
        %1046 = vmatpush1.msra.mxu0 0.0
        %1047 = vmatprep.subr.mxu0 0.0
        %1048 = vmatpush1.msra.mxu0 0.0
        %1049 = vmatprep.subr.mxu0 0.0
        %1050 = vmatpush1.msra.mxu0 0.0
        %1051 = vmatprep.subr.mxu0 0.0
        %1052 = vmatpush1.msra.mxu0 0.0
        %1053 = vmatprep.subr.mxu0 0.0
        %1054 = vmatpush1.msra.mxu0 0.0
        %1055 = vmatprep.subr.mxu0 0.0
        %1056 = vmatpush1.msra.mxu0 0.0
        %1057 = vmatprep.subr.mxu0 0.0
        %1058 = vmatpush1.msra.mxu0 0.0
        %1059 = vmatprep.subr.mxu0 0.0
        %1060 = vmatpush1.msra.mxu0 0.0
        %1061 = vmatprep.subr.mxu0 0.0
        %1062 = vmatpush1.msra.mxu0 0.0
        %1063 = vmatprep.subr.mxu0 0.0
        %1064 = vmatpush1.msra.mxu0 0.0
        %1065 = vmatprep.subr.mxu0 0.0
        %1066 = vmatpush1.msra.mxu0 0.0
        %1067 = vmatprep.subr.mxu0 0.0
        %1068 = vmatpush1.msra.mxu0 0.0
        %1069 = vmatprep.subr.mxu0 0.0
        %1070 = vmatpush1.msra.mxu0 0.0
        %1071 = vmatprep.subr.mxu0 0.0
        %1072 = vmatpush1.msra.mxu0 0.0
        %1073 = vmatprep.mubr.f32.mxu0 0.0
        %1074 = vmatmul.mubr.f32.gmra.mrb[0].mxu0 %v1004
        %v1075 = vpop.f32.mrb[0].mxu0
        %v1076 = vadd.f32 0.0, %v1075
        %v1077 = vpop.f32.mrb[0].mxu0
        %1078 = vmatprep.mubr.f32.mxu0 0.0
        %1079 = vmatmul.mubr.f32.gmra.mrb[0].mxu0 %v1007
        %v1080 = vpop.f32.mrb[0].mxu0
        %v1081 = vadd.f32 0.0, %v1080
        %v1082 = vpop.f32.mrb[0].mxu0
        %1083 = vdwg.mxu0
        %v1084 = vadd.f32 %v984, %v1076
        %v1085 = vadd.f32 %v989, %v1081
        %v1086 = vld [vmem:[%s7] sm:$0x1]
        %v1088 = vlaneseq
        %v1089 = vshrl.u32 %v1088, 7
        %v1090 = vsub.s32 0, %v1089
        %v1091 = vrot.slane %v1086, %v1090
        %v1093 = vadd.f32 %v1084, %v1091
        %v1094 = vadd.f32 %v1085, %v1091
        %v1095 = vmax.f32 %v1093, 0.0
        %v1096 = vmax.f32 %v1094, 0.0
        %1097 = vst [vmem:[%s311] sm:$0xff] %v1095
        %1098 = vst [vmem:[%s311 + $0x8] sm:$0xff] %v1096
        %s1099 = sand.u32 %s208, 1
        %s1100 = scalar_lea.sflag [#allocation5], %s1099
        %s1101 = sand.u32 %s208, 1
        %s1102 = smul.addr %s1101, 16
        %s1103 = scalar_lea.vmem [#allocation4], %s1102
        // Predicated region
        $region53: #{tpu_custom_call.1} parent=51 // pred_check
          %p1104 = pneg %p218
        $region54: #{tpu_custom_call.1} parent=51 // pred_check_branch
          %1106 = sbr.rel (%p1104) target = $region56
        $region55: #{tpu_custom_call.1} parent=51 // pred_region
          %s1108 = ssub.s32 256, 256
          %1109 = vsyncadd %s1100, %s1108
          %s1110 = smul.addr %s22, 2
          %s1111 = smul.addr %s1110, 128
          %s1112 = scalar_lea.hbm %s8, %s1111
          %s1113 = sshll.u32 %s1103, 4
          %s1114 = int_to_ptr.vmem [resolvable:$true] %s1113
          %1119 = dma.vmem_to_hbm [thread:$0]  %s1114, 256, %s1112, %s1100, 128, 128, 8
        $region56: #{tpu_custom_call.1} parent=51 // pred_fallthru
          _
      $region52: #{tpu_custom_call.1} parent=5 // pred_fallthru
        _
      %p1120 = scmp.le.s32.totalorder 2, %s17
      // Predicated region
      $region57: #{tpu_custom_call.1} parent=5 // pred_check
        %p1121 = pneg %p1120
      $region58: #{tpu_custom_call.1} parent=5 // pred_check_branch
        %1123 = sbr.rel (%p1121) target = $region60
      $region59: #{tpu_custom_call.1} parent=5 // pred_region
        %s1124 = ssub.s32 %s17, 2
        // Predicated region
        $region61: #{tpu_custom_call.1} parent=59 // pred_check
          %p1125 = pneg %p224
        $region62: #{tpu_custom_call.1} parent=59 // pred_check_branch
          %1127 = sbr.rel (%p1125) target = $region64
        $region63: #{tpu_custom_call.1} parent=59 // pred_region
          %s1128 = sand.u32 %s209, 1
          %s1129 = scalar_lea.sflag [#allocation5], %s1128
          %s1130 = sand.u32 %s209, 1
          %s1131 = smul.addr %s1130, 16
          %s1132 = scalar_lea.vmem [#allocation4], %s1131
          %1133 = dma.done %s1129, 256
        $region64: #{tpu_custom_call.1} parent=59 // pred_fallthru
          _
      $region60: #{tpu_custom_call.1} parent=5 // pred_fallthru
        _
    $region6: #{tpu_custom_call.1} parent=1 // loop_footer
      %s21 = sadd.s32 1, %s17
    $region7: #{tpu_custom_call.1} parent=1 // loop_footer_branch
      %16 = sbr.rel target = $region3
    $region8: #{tpu_custom_call.1} parent=1 // loop_exit
      _
    %1134 = vsyncpa [#allocation5], 1
    %s1135 = scalar_lea.sflag [#allocation5], 1
    %1136 = vsyncpa %s1135, 1

</llo_original>
